<compile_context>
chip_gen: v7x
topology: tpu7x:2x2x1
jax: 0.10.0
libtpu: 0.0.40
codegen_flags: <defaults>
</compile_context>

<pallas_src>
import functools

import jax
import jax.numpy as jnp
from jax.experimental import pallas as pl
from jax.experimental.pallas import tpu as pltpu

EPS = 1e-5


def _bn_scale_shift(acc, g, be, inv_m):
    """Fused single-pass BN statistics -> per-channel scale/shift (1, C, 1)."""
    s1 = jnp.sum(jnp.sum(acc, axis=2, keepdims=True), axis=0, keepdims=True)
    s2 = jnp.sum(jnp.sum(acc * acc, axis=2, keepdims=True), axis=0, keepdims=True)
    mean = s1 * inv_m
    var = jnp.maximum(s2 * inv_m - mean * mean, 0.0)
    scale = g * jax.lax.rsqrt(var + EPS)
    shift = be - mean * scale
    return scale, shift


def resblock_kernel(x_ref, w1_ref, g1_ref, be1_ref, w2_ref, g2_ref, be2_ref,
                    o_ref, hp_ref, *, H, W):
    # x_ref : (N, C, P)          P = H*W on lanes (lane-dense)
    # w1_ref: (C_out, 9*C_in)    column k*C+ci = 3x3 tap (di,dj)=(k//3,k%3), in-ch ci
    # w2_ref: (C_out, C_in)      1x1 conv weights
    # g*/be*: (C, 1)             BN gamma / beta
    # hp_ref: (N, C, P + 2*(W+1)) VMEM scratch: lane-padded ReLU activations
    N, C, P = x_ref.shape
    assert H * W == P
    PAD = (hp_ref.shape[2] - P) // 2            # = W + 1
    inv_m = 1.0 / float(N * P)

    x = x_ref[...]                              # residual source (pre-ReLU)
    h = jnp.maximum(x, 0.0)                     # ReLU #1

    # Stage the ReLU'd activations once into a lane-padded VMEM scratch so the
    # nine 3x3 taps become cheap static windowed loads: no per-tap strided
    # reshape copies, and no padded-tensor HBM round trip in the wrapper.
    hp_ref[...] = jnp.zeros(hp_ref.shape, jnp.float32)
    hp_ref[:, :, PAD:PAD + P] = h

    # Column-validity masks: a flattened lane shift wraps across image rows,
    # vertical out-of-range taps land in the zero padding of the scratch.
    j_idx = jax.lax.broadcasted_iota(jnp.int32, (1, 1, P), 2) % W
    left_ok = j_idx >= 1                        # tap dj=0 needs j-1 >= 0
    right_ok = j_idx <= W - 2                   # tap dj=2 needs j+1 <= W-1

    # --- Conv 3x3 (padding=1, stride=1): 9 shifted windows, channel mix as
    #     per-input-channel broadcast MACs on the VPU.
    acc = None
    for di in range(3):
        for dj in range(3):
            s = (di - 1) * W + (dj - 1)
            win = hp_ref[:, :, PAD + s:PAD + s + P]          # (N, C, P)
            if dj == 0:
                win = jnp.where(left_ok, win, 0.0)
            elif dj == 2:
                win = jnp.where(right_ok, win, 0.0)
            k = di * 3 + dj
            for ci in range(C):
                wcol = w1_ref[:, k * C + ci:k * C + ci + 1]  # (C_out, 1)
                term = wcol * win[:, ci:ci + 1, :]           # -> (N, C_out, P)
                acc = term if acc is None else acc + term
    # (conv bias b1 omitted: cancelled by BN mean subtraction)

    # --- BatchNorm #1 (training-mode batch stats, fused pass) + ReLU #2
    scale1, shift1 = _bn_scale_shift(acc, g1_ref[...], be1_ref[...], inv_m)
    h1 = jnp.maximum(acc * scale1 + shift1, 0.0)

    # --- Conv 1x1: per-input-channel broadcast MACs
    acc2 = None
    for ci in range(C):
        wcol = w2_ref[:, ci:ci + 1]                          # (C_out, 1)
        term = wcol * h1[:, ci:ci + 1, :]
        acc2 = term if acc2 is None else acc2 + term
    # (conv bias b2 omitted: cancelled by BN mean subtraction)

    # --- BatchNorm #2 + residual add (lane-dense, unmasked store)
    scale2, shift2 = _bn_scale_shift(acc2, g2_ref[...], be2_ref[...], inv_m)
    o_ref[...] = x + acc2 * scale2 + shift2


def resblock(x_nchw, w1_hwio, b1, g1, be1, w2_io, b2, g2, be2):
    """x_nchw: (N, C, H, W) float32.  Returns (N, C, H, W)."""
    # b1/b2 (conv biases feeding straight into BatchNorm) have no effect on
    # the block output: BN's per-channel mean subtraction removes them exactly.
    del b1, b2
    N, C, H, W = x_nchw.shape
    P = H * W
    pad = W + 1

    x_flat = x_nchw.reshape(N, C, P)                    # contiguous reshape, no copy
    w1_2d = jnp.transpose(w1_hwio.reshape(9 * C, C))    # (C_out, 9*C_in), 576 B
    w2_2d = jnp.transpose(w2_io)                        # (C_out, C_in)
    col = lambda v: v.reshape(C, 1).astype(jnp.float32)

    # NOTE: at (2, 4, 16, 16) the whole problem is 8 KiB — far below one tile —
    # so a grid / double-buffered pipeline (and a v7x dual-TensorCore split of
    # the BN batch statistics) would be pure per-step overhead.  For production
    # shapes, tile N/H with a ("parallel", ..., "arbitrary") grid and split BN
    # into partial-sum + finalize passes.
    vm = pl.BlockSpec(memory_space=pltpu.MemorySpace.VMEM)
    kernel = functools.partial(resblock_kernel, H=H, W=W)
    out_flat = pl.pallas_call(
        kernel,
        out_shape=jax.ShapeDtypeStruct((N, C, P), jnp.float32),
        in_specs=[vm] * 7,
        out_specs=vm,
        scratch_shapes=[pltpu.VMEM((N, C, P + 2 * pad), jnp.float32)],
    )(x_flat, w1_2d, col(g1), col(be1), w2_2d, col(g2), col(be2))
    return out_flat.reshape(N, C, H, W)


def resblock_ref(x_nhwc, w1_hwio, b1, g1, be1, w2_io, b2, g2, be2):
    """Pure-JAX reference (NHWC), including the conv biases."""
    def bn(h, g, be):
        mean = h.mean(axis=(0, 1, 2), keepdims=True)
        var = ((h - mean) ** 2).mean(axis=(0, 1, 2), keepdims=True)
        return g * (h - mean) / jnp.sqrt(var + EPS) + be

    h = jax.nn.relu(x_nhwc)
    h = jax.lax.conv_general_dilated(
        h, w1_hwio, (1, 1), "SAME",
        dimension_numbers=("NHWC", "HWIO", "NHWC")) + b1
    h = bn(h, g1, be1)
    h = jax.nn.relu(h)
    h = jnp.einsum("nhwc,co->nhwo", h, w2_io) + b2
    h = bn(h, g2, be2)
    return x_nhwc + h


if __name__ == "__main__":
    N, C, H, W = 2, 4, 16, 16   # dim = 4
    key = jax.random.PRNGKey(0)
    ks = jax.random.split(key, 9)

    x_nchw = jax.random.normal(ks[0], (N, C, H, W), jnp.float32)
    # Deterministic synthetic parameters (Conv2d(dim,dim,3), Conv2d(dim,dim,1), BN affine)
    w1_hwio = 0.1 * jax.random.normal(ks[1], (3, 3, C, C), jnp.float32)  # HWIO
    b1 = 0.1 * jax.random.normal(ks[2], (C,), jnp.float32)
    g1 = 1.0 + 0.1 * jax.random.normal(ks[3], (C,), jnp.float32)
    be1 = 0.1 * jax.random.normal(ks[4], (C,), jnp.float32)
    w2_io = 0.1 * jax.random.normal(ks[5], (C, C), jnp.float32)          # [in, out]
    b2 = 0.1 * jax.random.normal(ks[6], (C,), jnp.float32)
    g2 = 1.0 + 0.1 * jax.random.normal(ks[7], (C,), jnp.float32)
    be2 = 0.1 * jax.random.normal(ks[8], (C,), jnp.float32)

    out = resblock(x_nchw, w1_hwio, b1, g1, be1, w2_io, b2, g2, be2)
    out = jax.block_until_ready(out)

    # correctness check against a pure-JAX reference (which keeps b1/b2)
    x_nhwc = jnp.transpose(x_nchw, (0, 2, 3, 1))
    ref = resblock_ref(x_nhwc, w1_hwio, b1, g1, be1, w2_io, b2, g2, be2)
    ref_nchw = jnp.transpose(ref, (0, 3, 1, 2))
    assert out.shape == x_nchw.shape and out.dtype == jnp.float32
    assert jnp.allclose(out, ref_nchw, atol=1e-4, rtol=1e-4), \
        float(jnp.max(jnp.abs(out - ref_nchw)))

    print("KERNEL_OK")
</pallas_src>

<mosaic_0001>
module attributes {stable_mosaic.version = 11 : i64} {
  func.func @resblock_kernel(%arg0: memref<2x4x256xf32, #tpu.memory_space<vmem>>, %arg1: memref<4x36xf32, #tpu.memory_space<vmem>>, %arg2: memref<4x1xf32, #tpu.memory_space<vmem>>, %arg3: memref<4x1xf32, #tpu.memory_space<vmem>>, %arg4: memref<4x4xf32, #tpu.memory_space<vmem>>, %arg5: memref<4x1xf32, #tpu.memory_space<vmem>>, %arg6: memref<4x1xf32, #tpu.memory_space<vmem>>, %arg7: memref<2x4x256xf32, #tpu.memory_space<vmem>>, %arg8: memref<2x4x290xf32, #tpu.memory_space<vmem>>) attributes {dimension_semantics = [], scalar_prefetch = 0 : i64, scratch_operands = 1 : i64, tpu.core_type = #tpu.core_type<tc>} {
    %c0 = arith.constant 0 : index
    %c0_0 = arith.constant 0 : index
    %c0_1 = arith.constant 0 : index
    %0 = vector.load %arg0[%c0, %c0_0, %c0_1] : memref<2x4x256xf32, #tpu.memory_space<vmem>>, vector<2x4x256xf32>
    %cst = arith.constant 0.000000e+00 : f32
    %1 = vector.broadcast %cst : f32 to vector<2x4x256xf32>
    %2 = arith.maximumf %0, %1 : vector<2x4x256xf32>
    %cst_2 = arith.constant 0.000000e+00 : f32
    %3 = vector.broadcast %cst_2 : f32 to vector<2x4x290xf32>
    %c0_3 = arith.constant 0 : index
    %c0_4 = arith.constant 0 : index
    %c0_5 = arith.constant 0 : index
    %4 = vector.load %arg8[%c0_3, %c0_4, %c0_5] : memref<2x4x290xf32, #tpu.memory_space<vmem>>, vector<2x4x290xf32>
    tpu.vector_store %arg8[%c0_3, %c0_4, %c0_5], %3 {strides = array<i32>} : memref<2x4x290xf32, #tpu.memory_space<vmem>>, vector<2x4x290xf32>,
    %c0_6 = arith.constant 0 : index
    %c0_7 = arith.constant 0 : index
    %c17 = arith.constant 17 : index
    %5 = vector.load %arg8[%c0_6, %c0_7, %c17] : memref<2x4x290xf32, #tpu.memory_space<vmem>>, vector<2x4x256xf32>
    tpu.vector_store %arg8[%c0_6, %c0_7, %c17], %2 {strides = array<i32>} : memref<2x4x290xf32, #tpu.memory_space<vmem>>, vector<2x4x256xf32>,
    %6 = tpu.iota {dimensions = array<i32: 2>} : vector<1x1x256xi32>
    %c16_i32 = arith.constant 16 : i32
    %c0_i32 = arith.constant 0 : i32
    %7 = arith.cmpi eq, %c16_i32, %c0_i32 : i32
    %c1_i32 = arith.constant 1 : i32
    %8 = arith.select %7, %c1_i32, %c16_i32 : i32
    %9 = vector.broadcast %8 : i32 to vector<1x1x256xi32>
    %10 = arith.remsi %6, %9 : vector<1x1x256xi32>
    %c0_i32_8 = arith.constant 0 : i32
    %11 = vector.broadcast %c0_i32_8 : i32 to vector<1x1x256xi32>
    %12 = arith.cmpi ne, %10, %11 : vector<1x1x256xi32>
    %c0_i32_9 = arith.constant 0 : i32
    %13 = vector.broadcast %c0_i32_9 : i32 to vector<1x1x256xi32>
    %14 = arith.cmpi slt, %10, %13 : vector<1x1x256xi32>
    %c0_i32_10 = arith.constant 0 : i32
    %15 = arith.cmpi slt, %8, %c0_i32_10 : i32
    %16 = vector.broadcast %15 : i1 to vector<1x1x256xi1>
    %17 = vector.broadcast %16 : vector<1x1x256xi1> to vector<1x1x256xi1>
    %18 = arith.xori %14, %17 : vector<1x1x256xi1>
    %19 = arith.andi %18, %12 : vector<1x1x256xi1>
    %20 = vector.broadcast %8 : i32 to vector<1x1x256xi32>
    %21 = arith.addi %10, %20 : vector<1x1x256xi32>
    %22 = arith.select %19, %21, %10 : vector<1x1x256xi1>, vector<1x1x256xi32>
    %c1_i32_11 = arith.constant 1 : i32
    %23 = vector.broadcast %c1_i32_11 : i32 to vector<1x1x256xi32>
    %24 = arith.cmpi sge, %22, %23 : vector<1x1x256xi32>
    %c14_i32 = arith.constant 14 : i32
    %25 = vector.broadcast %c14_i32 : i32 to vector<1x1x256xi32>
    %26 = arith.cmpi sle, %22, %25 : vector<1x1x256xi32>
    %c0_12 = arith.constant 0 : index
    %c0_13 = arith.constant 0 : index
    %c0_14 = arith.constant 0 : index
    %27 = vector.load %arg8[%c0_12, %c0_13, %c0_14] : memref<2x4x290xf32, #tpu.memory_space<vmem>>, vector<2x4x256xf32>
    %cst_15 = arith.constant 0.000000e+00 : f32
    %28 = vector.shape_cast %24 : vector<1x1x256xi1> to vector<1x1x256xi1>
    %29 = vector.broadcast %28 : vector<1x1x256xi1> to vector<2x4x256xi1>
    %30 = vector.broadcast %cst_15 : f32 to vector<2x4x256xf32>
    %31 = arith.select %29, %27, %30 : vector<2x4x256xi1>, vector<2x4x256xf32>
    %c0_16 = arith.constant 0 : index
    %c0_17 = arith.constant 0 : index
    %32 = vector.load %arg1[%c0_16, %c0_17] : memref<4x36xf32, #tpu.memory_space<vmem>>, vector<4x1xf32>
    %33 = vector.extract_strided_slice %31 {offsets = [0, 0, 0], sizes = [2, 1, 256], strides = [1, 1, 1]} : vector<2x4x256xf32> to vector<2x1x256xf32>
    %34 = vector.shape_cast %32 : vector<4x1xf32> to vector<1x4x1xf32>
    %35 = vector.broadcast %34 : vector<1x4x1xf32> to vector<2x4x256xf32>
    %36 = vector.broadcast %33 : vector<2x1x256xf32> to vector<2x4x256xf32>
    %37 = arith.mulf %35, %36 : vector<2x4x256xf32>
    %c0_18 = arith.constant 0 : index
    %c1 = arith.constant 1 : index
    %38 = vector.load %arg1[%c0_18, %c1] : memref<4x36xf32, #tpu.memory_space<vmem>>, vector<4x1xf32>
    %39 = vector.extract_strided_slice %31 {offsets = [0, 1, 0], sizes = [2, 1, 256], strides = [1, 1, 1]} : vector<2x4x256xf32> to vector<2x1x256xf32>
    %40 = vector.shape_cast %38 : vector<4x1xf32> to vector<1x4x1xf32>
    %41 = vector.broadcast %40 : vector<1x4x1xf32> to vector<2x4x256xf32>
    %42 = vector.broadcast %39 : vector<2x1x256xf32> to vector<2x4x256xf32>
    %43 = arith.mulf %41, %42 : vector<2x4x256xf32>
    %44 = arith.addf %37, %43 : vector<2x4x256xf32>
    %c0_19 = arith.constant 0 : index
    %c2 = arith.constant 2 : index
    %45 = vector.load %arg1[%c0_19, %c2] : memref<4x36xf32, #tpu.memory_space<vmem>>, vector<4x1xf32>
    %46 = vector.extract_strided_slice %31 {offsets = [0, 2, 0], sizes = [2, 1, 256], strides = [1, 1, 1]} : vector<2x4x256xf32> to vector<2x1x256xf32>
    %47 = vector.shape_cast %45 : vector<4x1xf32> to vector<1x4x1xf32>
    %48 = vector.broadcast %47 : vector<1x4x1xf32> to vector<2x4x256xf32>
    %49 = vector.broadcast %46 : vector<2x1x256xf32> to vector<2x4x256xf32>
    %50 = arith.mulf %48, %49 : vector<2x4x256xf32>
    %51 = arith.addf %44, %50 : vector<2x4x256xf32>
    %c0_20 = arith.constant 0 : index
    %c3 = arith.constant 3 : index
    %52 = vector.load %arg1[%c0_20, %c3] : memref<4x36xf32, #tpu.memory_space<vmem>>, vector<4x1xf32>
    %53 = vector.extract_strided_slice %31 {offsets = [0, 3, 0], sizes = [2, 1, 256], strides = [1, 1, 1]} : vector<2x4x256xf32> to vector<2x1x256xf32>
    %54 = vector.shape_cast %52 : vector<4x1xf32> to vector<1x4x1xf32>
    %55 = vector.broadcast %54 : vector<1x4x1xf32> to vector<2x4x256xf32>
    %56 = vector.broadcast %53 : vector<2x1x256xf32> to vector<2x4x256xf32>
    %57 = arith.mulf %55, %56 : vector<2x4x256xf32>
    %58 = arith.addf %51, %57 : vector<2x4x256xf32>
    %c0_21 = arith.constant 0 : index
    %c0_22 = arith.constant 0 : index
    %c1_23 = arith.constant 1 : index
    %59 = vector.load %arg8[%c0_21, %c0_22, %c1_23] : memref<2x4x290xf32, #tpu.memory_space<vmem>>, vector<2x4x256xf32>
    %c0_24 = arith.constant 0 : index
    %c4 = arith.constant 4 : index
    %60 = vector.load %arg1[%c0_24, %c4] : memref<4x36xf32, #tpu.memory_space<vmem>>, vector<4x1xf32>
    %61 = vector.extract_strided_slice %59 {offsets = [0, 0, 0], sizes = [2, 1, 256], strides = [1, 1, 1]} : vector<2x4x256xf32> to vector<2x1x256xf32>
    %62 = vector.shape_cast %60 : vector<4x1xf32> to vector<1x4x1xf32>
    %63 = vector.broadcast %62 : vector<1x4x1xf32> to vector<2x4x256xf32>
    %64 = vector.broadcast %61 : vector<2x1x256xf32> to vector<2x4x256xf32>
    %65 = arith.mulf %63, %64 : vector<2x4x256xf32>
    %66 = arith.addf %58, %65 : vector<2x4x256xf32>
    %c0_25 = arith.constant 0 : index
    %c5 = arith.constant 5 : index
    %67 = vector.load %arg1[%c0_25, %c5] : memref<4x36xf32, #tpu.memory_space<vmem>>, vector<4x1xf32>
    %68 = vector.extract_strided_slice %59 {offsets = [0, 1, 0], sizes = [2, 1, 256], strides = [1, 1, 1]} : vector<2x4x256xf32> to vector<2x1x256xf32>
    %69 = vector.shape_cast %67 : vector<4x1xf32> to vector<1x4x1xf32>
    %70 = vector.broadcast %69 : vector<1x4x1xf32> to vector<2x4x256xf32>
    %71 = vector.broadcast %68 : vector<2x1x256xf32> to vector<2x4x256xf32>
    %72 = arith.mulf %70, %71 : vector<2x4x256xf32>
    %73 = arith.addf %66, %72 : vector<2x4x256xf32>
    %c0_26 = arith.constant 0 : index
    %c6 = arith.constant 6 : index
    %74 = vector.load %arg1[%c0_26, %c6] : memref<4x36xf32, #tpu.memory_space<vmem>>, vector<4x1xf32>
    %75 = vector.extract_strided_slice %59 {offsets = [0, 2, 0], sizes = [2, 1, 256], strides = [1, 1, 1]} : vector<2x4x256xf32> to vector<2x1x256xf32>
    %76 = vector.shape_cast %74 : vector<4x1xf32> to vector<1x4x1xf32>
    %77 = vector.broadcast %76 : vector<1x4x1xf32> to vector<2x4x256xf32>
    %78 = vector.broadcast %75 : vector<2x1x256xf32> to vector<2x4x256xf32>
    %79 = arith.mulf %77, %78 : vector<2x4x256xf32>
    %80 = arith.addf %73, %79 : vector<2x4x256xf32>
    %c0_27 = arith.constant 0 : index
    %c7 = arith.constant 7 : index
    %81 = vector.load %arg1[%c0_27, %c7] : memref<4x36xf32, #tpu.memory_space<vmem>>, vector<4x1xf32>
    %82 = vector.extract_strided_slice %59 {offsets = [0, 3, 0], sizes = [2, 1, 256], strides = [1, 1, 1]} : vector<2x4x256xf32> to vector<2x1x256xf32>
    %83 = vector.shape_cast %81 : vector<4x1xf32> to vector<1x4x1xf32>
    %84 = vector.broadcast %83 : vector<1x4x1xf32> to vector<2x4x256xf32>
    %85 = vector.broadcast %82 : vector<2x1x256xf32> to vector<2x4x256xf32>
    %86 = arith.mulf %84, %85 : vector<2x4x256xf32>
    %87 = arith.addf %80, %86 : vector<2x4x256xf32>
    %c0_28 = arith.constant 0 : index
    %c0_29 = arith.constant 0 : index
    %c2_30 = arith.constant 2 : index
    %88 = vector.load %arg8[%c0_28, %c0_29, %c2_30] : memref<2x4x290xf32, #tpu.memory_space<vmem>>, vector<2x4x256xf32>
    %cst_31 = arith.constant 0.000000e+00 : f32
    %89 = vector.shape_cast %26 : vector<1x1x256xi1> to vector<1x1x256xi1>
    %90 = vector.broadcast %89 : vector<1x1x256xi1> to vector<2x4x256xi1>
    %91 = vector.broadcast %cst_31 : f32 to vector<2x4x256xf32>
    %92 = arith.select %90, %88, %91 : vector<2x4x256xi1>, vector<2x4x256xf32>
    %c0_32 = arith.constant 0 : index
    %c8 = arith.constant 8 : index
    %93 = vector.load %arg1[%c0_32, %c8] : memref<4x36xf32, #tpu.memory_space<vmem>>, vector<4x1xf32>
    %94 = vector.extract_strided_slice %92 {offsets = [0, 0, 0], sizes = [2, 1, 256], strides = [1, 1, 1]} : vector<2x4x256xf32> to vector<2x1x256xf32>
    %95 = vector.shape_cast %93 : vector<4x1xf32> to vector<1x4x1xf32>
    %96 = vector.broadcast %95 : vector<1x4x1xf32> to vector<2x4x256xf32>
    %97 = vector.broadcast %94 : vector<2x1x256xf32> to vector<2x4x256xf32>
    %98 = arith.mulf %96, %97 : vector<2x4x256xf32>
    %99 = arith.addf %87, %98 : vector<2x4x256xf32>
    %c0_33 = arith.constant 0 : index
    %c9 = arith.constant 9 : index
    %100 = vector.load %arg1[%c0_33, %c9] : memref<4x36xf32, #tpu.memory_space<vmem>>, vector<4x1xf32>
    %101 = vector.extract_strided_slice %92 {offsets = [0, 1, 0], sizes = [2, 1, 256], strides = [1, 1, 1]} : vector<2x4x256xf32> to vector<2x1x256xf32>
    %102 = vector.shape_cast %100 : vector<4x1xf32> to vector<1x4x1xf32>
    %103 = vector.broadcast %102 : vector<1x4x1xf32> to vector<2x4x256xf32>
    %104 = vector.broadcast %101 : vector<2x1x256xf32> to vector<2x4x256xf32>
    %105 = arith.mulf %103, %104 : vector<2x4x256xf32>
    %106 = arith.addf %99, %105 : vector<2x4x256xf32>
    %c0_34 = arith.constant 0 : index
    %c10 = arith.constant 10 : index
    %107 = vector.load %arg1[%c0_34, %c10] : memref<4x36xf32, #tpu.memory_space<vmem>>, vector<4x1xf32>
    %108 = vector.extract_strided_slice %92 {offsets = [0, 2, 0], sizes = [2, 1, 256], strides = [1, 1, 1]} : vector<2x4x256xf32> to vector<2x1x256xf32>
    %109 = vector.shape_cast %107 : vector<4x1xf32> to vector<1x4x1xf32>
    %110 = vector.broadcast %109 : vector<1x4x1xf32> to vector<2x4x256xf32>
    %111 = vector.broadcast %108 : vector<2x1x256xf32> to vector<2x4x256xf32>
    %112 = arith.mulf %110, %111 : vector<2x4x256xf32>
    %113 = arith.addf %106, %112 : vector<2x4x256xf32>
    %c0_35 = arith.constant 0 : index
    %c11 = arith.constant 11 : index
    %114 = vector.load %arg1[%c0_35, %c11] : memref<4x36xf32, #tpu.memory_space<vmem>>, vector<4x1xf32>
    %115 = vector.extract_strided_slice %92 {offsets = [0, 3, 0], sizes = [2, 1, 256], strides = [1, 1, 1]} : vector<2x4x256xf32> to vector<2x1x256xf32>
    %116 = vector.shape_cast %114 : vector<4x1xf32> to vector<1x4x1xf32>
    %117 = vector.broadcast %116 : vector<1x4x1xf32> to vector<2x4x256xf32>
    %118 = vector.broadcast %115 : vector<2x1x256xf32> to vector<2x4x256xf32>
    %119 = arith.mulf %117, %118 : vector<2x4x256xf32>
    %120 = arith.addf %113, %119 : vector<2x4x256xf32>
    %c0_36 = arith.constant 0 : index
    %c0_37 = arith.constant 0 : index
    %c16 = arith.constant 16 : index
    %121 = vector.load %arg8[%c0_36, %c0_37, %c16] : memref<2x4x290xf32, #tpu.memory_space<vmem>>, vector<2x4x256xf32>
    %cst_38 = arith.constant 0.000000e+00 : f32
    %122 = vector.shape_cast %24 : vector<1x1x256xi1> to vector<1x1x256xi1>
    %123 = vector.broadcast %122 : vector<1x1x256xi1> to vector<2x4x256xi1>
    %124 = vector.broadcast %cst_38 : f32 to vector<2x4x256xf32>
    %125 = arith.select %123, %121, %124 : vector<2x4x256xi1>, vector<2x4x256xf32>
    %c0_39 = arith.constant 0 : index
    %c12 = arith.constant 12 : index
    %126 = vector.load %arg1[%c0_39, %c12] : memref<4x36xf32, #tpu.memory_space<vmem>>, vector<4x1xf32>
    %127 = vector.extract_strided_slice %125 {offsets = [0, 0, 0], sizes = [2, 1, 256], strides = [1, 1, 1]} : vector<2x4x256xf32> to vector<2x1x256xf32>
    %128 = vector.shape_cast %126 : vector<4x1xf32> to vector<1x4x1xf32>
    %129 = vector.broadcast %128 : vector<1x4x1xf32> to vector<2x4x256xf32>
    %130 = vector.broadcast %127 : vector<2x1x256xf32> to vector<2x4x256xf32>
    %131 = arith.mulf %129, %130 : vector<2x4x256xf32>
    %132 = arith.addf %120, %131 : vector<2x4x256xf32>
    %c0_40 = arith.constant 0 : index
    %c13 = arith.constant 13 : index
    %133 = vector.load %arg1[%c0_40, %c13] : memref<4x36xf32, #tpu.memory_space<vmem>>, vector<4x1xf32>
    %134 = vector.extract_strided_slice %125 {offsets = [0, 1, 0], sizes = [2, 1, 256], strides = [1, 1, 1]} : vector<2x4x256xf32> to vector<2x1x256xf32>
    %135 = vector.shape_cast %133 : vector<4x1xf32> to vector<1x4x1xf32>
    %136 = vector.broadcast %135 : vector<1x4x1xf32> to vector<2x4x256xf32>
    %137 = vector.broadcast %134 : vector<2x1x256xf32> to vector<2x4x256xf32>
    %138 = arith.mulf %136, %137 : vector<2x4x256xf32>
    %139 = arith.addf %132, %138 : vector<2x4x256xf32>
    %c0_41 = arith.constant 0 : index
    %c14 = arith.constant 14 : index
    %140 = vector.load %arg1[%c0_41, %c14] : memref<4x36xf32, #tpu.memory_space<vmem>>, vector<4x1xf32>
    %141 = vector.extract_strided_slice %125 {offsets = [0, 2, 0], sizes = [2, 1, 256], strides = [1, 1, 1]} : vector<2x4x256xf32> to vector<2x1x256xf32>
    %142 = vector.shape_cast %140 : vector<4x1xf32> to vector<1x4x1xf32>
    %143 = vector.broadcast %142 : vector<1x4x1xf32> to vector<2x4x256xf32>
    %144 = vector.broadcast %141 : vector<2x1x256xf32> to vector<2x4x256xf32>
    %145 = arith.mulf %143, %144 : vector<2x4x256xf32>
    %146 = arith.addf %139, %145 : vector<2x4x256xf32>
    %c0_42 = arith.constant 0 : index
    %c15 = arith.constant 15 : index
    %147 = vector.load %arg1[%c0_42, %c15] : memref<4x36xf32, #tpu.memory_space<vmem>>, vector<4x1xf32>
    %148 = vector.extract_strided_slice %125 {offsets = [0, 3, 0], sizes = [2, 1, 256], strides = [1, 1, 1]} : vector<2x4x256xf32> to vector<2x1x256xf32>
    %149 = vector.shape_cast %147 : vector<4x1xf32> to vector<1x4x1xf32>
    %150 = vector.broadcast %149 : vector<1x4x1xf32> to vector<2x4x256xf32>
    %151 = vector.broadcast %148 : vector<2x1x256xf32> to vector<2x4x256xf32>
    %152 = arith.mulf %150, %151 : vector<2x4x256xf32>
    %153 = arith.addf %146, %152 : vector<2x4x256xf32>
    %c0_43 = arith.constant 0 : index
    %c0_44 = arith.constant 0 : index
    %c17_45 = arith.constant 17 : index
    %154 = vector.load %arg8[%c0_43, %c0_44, %c17_45] : memref<2x4x290xf32, #tpu.memory_space<vmem>>, vector<2x4x256xf32>
    %c0_46 = arith.constant 0 : index
    %c16_47 = arith.constant 16 : index
    %155 = vector.load %arg1[%c0_46, %c16_47] : memref<4x36xf32, #tpu.memory_space<vmem>>, vector<4x1xf32>
    %156 = vector.extract_strided_slice %154 {offsets = [0, 0, 0], sizes = [2, 1, 256], strides = [1, 1, 1]} : vector<2x4x256xf32> to vector<2x1x256xf32>
    %157 = vector.shape_cast %155 : vector<4x1xf32> to vector<1x4x1xf32>
    %158 = vector.broadcast %157 : vector<1x4x1xf32> to vector<2x4x256xf32>
    %159 = vector.broadcast %156 : vector<2x1x256xf32> to vector<2x4x256xf32>
    %160 = arith.mulf %158, %159 : vector<2x4x256xf32>
    %161 = arith.addf %153, %160 : vector<2x4x256xf32>
    %c0_48 = arith.constant 0 : index
    %c17_49 = arith.constant 17 : index
    %162 = vector.load %arg1[%c0_48, %c17_49] : memref<4x36xf32, #tpu.memory_space<vmem>>, vector<4x1xf32>
    %163 = vector.extract_strided_slice %154 {offsets = [0, 1, 0], sizes = [2, 1, 256], strides = [1, 1, 1]} : vector<2x4x256xf32> to vector<2x1x256xf32>
    %164 = vector.shape_cast %162 : vector<4x1xf32> to vector<1x4x1xf32>
    %165 = vector.broadcast %164 : vector<1x4x1xf32> to vector<2x4x256xf32>
    %166 = vector.broadcast %163 : vector<2x1x256xf32> to vector<2x4x256xf32>
    %167 = arith.mulf %165, %166 : vector<2x4x256xf32>
    %168 = arith.addf %161, %167 : vector<2x4x256xf32>
    %c0_50 = arith.constant 0 : index
    %c18 = arith.constant 18 : index
    %169 = vector.load %arg1[%c0_50, %c18] : memref<4x36xf32, #tpu.memory_space<vmem>>, vector<4x1xf32>
    %170 = vector.extract_strided_slice %154 {offsets = [0, 2, 0], sizes = [2, 1, 256], strides = [1, 1, 1]} : vector<2x4x256xf32> to vector<2x1x256xf32>
    %171 = vector.shape_cast %169 : vector<4x1xf32> to vector<1x4x1xf32>
    %172 = vector.broadcast %171 : vector<1x4x1xf32> to vector<2x4x256xf32>
    %173 = vector.broadcast %170 : vector<2x1x256xf32> to vector<2x4x256xf32>
    %174 = arith.mulf %172, %173 : vector<2x4x256xf32>
    %175 = arith.addf %168, %174 : vector<2x4x256xf32>
    %c0_51 = arith.constant 0 : index
    %c19 = arith.constant 19 : index
    %176 = vector.load %arg1[%c0_51, %c19] : memref<4x36xf32, #tpu.memory_space<vmem>>, vector<4x1xf32>
    %177 = vector.extract_strided_slice %154 {offsets = [0, 3, 0], sizes = [2, 1, 256], strides = [1, 1, 1]} : vector<2x4x256xf32> to vector<2x1x256xf32>
    %178 = vector.shape_cast %176 : vector<4x1xf32> to vector<1x4x1xf32>
    %179 = vector.broadcast %178 : vector<1x4x1xf32> to vector<2x4x256xf32>
    %180 = vector.broadcast %177 : vector<2x1x256xf32> to vector<2x4x256xf32>
    %181 = arith.mulf %179, %180 : vector<2x4x256xf32>
    %182 = arith.addf %175, %181 : vector<2x4x256xf32>
    %c0_52 = arith.constant 0 : index
    %c0_53 = arith.constant 0 : index
    %c18_54 = arith.constant 18 : index
    %183 = vector.load %arg8[%c0_52, %c0_53, %c18_54] : memref<2x4x290xf32, #tpu.memory_space<vmem>>, vector<2x4x256xf32>
    %cst_55 = arith.constant 0.000000e+00 : f32
    %184 = vector.shape_cast %26 : vector<1x1x256xi1> to vector<1x1x256xi1>
    %185 = vector.broadcast %184 : vector<1x1x256xi1> to vector<2x4x256xi1>
    %186 = vector.broadcast %cst_55 : f32 to vector<2x4x256xf32>
    %187 = arith.select %185, %183, %186 : vector<2x4x256xi1>, vector<2x4x256xf32>
    %c0_56 = arith.constant 0 : index
    %c20 = arith.constant 20 : index
    %188 = vector.load %arg1[%c0_56, %c20] : memref<4x36xf32, #tpu.memory_space<vmem>>, vector<4x1xf32>
    %189 = vector.extract_strided_slice %187 {offsets = [0, 0, 0], sizes = [2, 1, 256], strides = [1, 1, 1]} : vector<2x4x256xf32> to vector<2x1x256xf32>
    %190 = vector.shape_cast %188 : vector<4x1xf32> to vector<1x4x1xf32>
    %191 = vector.broadcast %190 : vector<1x4x1xf32> to vector<2x4x256xf32>
    %192 = vector.broadcast %189 : vector<2x1x256xf32> to vector<2x4x256xf32>
    %193 = arith.mulf %191, %192 : vector<2x4x256xf32>
    %194 = arith.addf %182, %193 : vector<2x4x256xf32>
    %c0_57 = arith.constant 0 : index
    %c21 = arith.constant 21 : index
    %195 = vector.load %arg1[%c0_57, %c21] : memref<4x36xf32, #tpu.memory_space<vmem>>, vector<4x1xf32>
    %196 = vector.extract_strided_slice %187 {offsets = [0, 1, 0], sizes = [2, 1, 256], strides = [1, 1, 1]} : vector<2x4x256xf32> to vector<2x1x256xf32>
    %197 = vector.shape_cast %195 : vector<4x1xf32> to vector<1x4x1xf32>
    %198 = vector.broadcast %197 : vector<1x4x1xf32> to vector<2x4x256xf32>
    %199 = vector.broadcast %196 : vector<2x1x256xf32> to vector<2x4x256xf32>
    %200 = arith.mulf %198, %199 : vector<2x4x256xf32>
    %201 = arith.addf %194, %200 : vector<2x4x256xf32>
    %c0_58 = arith.constant 0 : index
    %c22 = arith.constant 22 : index
    %202 = vector.load %arg1[%c0_58, %c22] : memref<4x36xf32, #tpu.memory_space<vmem>>, vector<4x1xf32>
    %203 = vector.extract_strided_slice %187 {offsets = [0, 2, 0], sizes = [2, 1, 256], strides = [1, 1, 1]} : vector<2x4x256xf32> to vector<2x1x256xf32>
    %204 = vector.shape_cast %202 : vector<4x1xf32> to vector<1x4x1xf32>
    %205 = vector.broadcast %204 : vector<1x4x1xf32> to vector<2x4x256xf32>
    %206 = vector.broadcast %203 : vector<2x1x256xf32> to vector<2x4x256xf32>
    %207 = arith.mulf %205, %206 : vector<2x4x256xf32>
    %208 = arith.addf %201, %207 : vector<2x4x256xf32>
    %c0_59 = arith.constant 0 : index
    %c23 = arith.constant 23 : index
    %209 = vector.load %arg1[%c0_59, %c23] : memref<4x36xf32, #tpu.memory_space<vmem>>, vector<4x1xf32>
    %210 = vector.extract_strided_slice %187 {offsets = [0, 3, 0], sizes = [2, 1, 256], strides = [1, 1, 1]} : vector<2x4x256xf32> to vector<2x1x256xf32>
    %211 = vector.shape_cast %209 : vector<4x1xf32> to vector<1x4x1xf32>
    %212 = vector.broadcast %211 : vector<1x4x1xf32> to vector<2x4x256xf32>
    %213 = vector.broadcast %210 : vector<2x1x256xf32> to vector<2x4x256xf32>
    %214 = arith.mulf %212, %213 : vector<2x4x256xf32>
    %215 = arith.addf %208, %214 : vector<2x4x256xf32>
    %c0_60 = arith.constant 0 : index
    %c0_61 = arith.constant 0 : index
    %c32 = arith.constant 32 : index
    %216 = vector.load %arg8[%c0_60, %c0_61, %c32] : memref<2x4x290xf32, #tpu.memory_space<vmem>>, vector<2x4x256xf32>
    %cst_62 = arith.constant 0.000000e+00 : f32
    %217 = vector.shape_cast %24 : vector<1x1x256xi1> to vector<1x1x256xi1>
    %218 = vector.broadcast %217 : vector<1x1x256xi1> to vector<2x4x256xi1>
    %219 = vector.broadcast %cst_62 : f32 to vector<2x4x256xf32>
    %220 = arith.select %218, %216, %219 : vector<2x4x256xi1>, vector<2x4x256xf32>
    %c0_63 = arith.constant 0 : index
    %c24 = arith.constant 24 : index
    %221 = vector.load %arg1[%c0_63, %c24] : memref<4x36xf32, #tpu.memory_space<vmem>>, vector<4x1xf32>
    %222 = vector.extract_strided_slice %220 {offsets = [0, 0, 0], sizes = [2, 1, 256], strides = [1, 1, 1]} : vector<2x4x256xf32> to vector<2x1x256xf32>
    %223 = vector.shape_cast %221 : vector<4x1xf32> to vector<1x4x1xf32>
    %224 = vector.broadcast %223 : vector<1x4x1xf32> to vector<2x4x256xf32>
    %225 = vector.broadcast %222 : vector<2x1x256xf32> to vector<2x4x256xf32>
    %226 = arith.mulf %224, %225 : vector<2x4x256xf32>
    %227 = arith.addf %215, %226 : vector<2x4x256xf32>
    %c0_64 = arith.constant 0 : index
    %c25 = arith.constant 25 : index
    %228 = vector.load %arg1[%c0_64, %c25] : memref<4x36xf32, #tpu.memory_space<vmem>>, vector<4x1xf32>
    %229 = vector.extract_strided_slice %220 {offsets = [0, 1, 0], sizes = [2, 1, 256], strides = [1, 1, 1]} : vector<2x4x256xf32> to vector<2x1x256xf32>
    %230 = vector.shape_cast %228 : vector<4x1xf32> to vector<1x4x1xf32>
    %231 = vector.broadcast %230 : vector<1x4x1xf32> to vector<2x4x256xf32>
    %232 = vector.broadcast %229 : vector<2x1x256xf32> to vector<2x4x256xf32>
    %233 = arith.mulf %231, %232 : vector<2x4x256xf32>
    %234 = arith.addf %227, %233 : vector<2x4x256xf32>
    %c0_65 = arith.constant 0 : index
    %c26 = arith.constant 26 : index
    %235 = vector.load %arg1[%c0_65, %c26] : memref<4x36xf32, #tpu.memory_space<vmem>>, vector<4x1xf32>
    %236 = vector.extract_strided_slice %220 {offsets = [0, 2, 0], sizes = [2, 1, 256], strides = [1, 1, 1]} : vector<2x4x256xf32> to vector<2x1x256xf32>
    %237 = vector.shape_cast %235 : vector<4x1xf32> to vector<1x4x1xf32>
    %238 = vector.broadcast %237 : vector<1x4x1xf32> to vector<2x4x256xf32>
    %239 = vector.broadcast %236 : vector<2x1x256xf32> to vector<2x4x256xf32>
    %240 = arith.mulf %238, %239 : vector<2x4x256xf32>
    %241 = arith.addf %234, %240 : vector<2x4x256xf32>
    %c0_66 = arith.constant 0 : index
    %c27 = arith.constant 27 : index
    %242 = vector.load %arg1[%c0_66, %c27] : memref<4x36xf32, #tpu.memory_space<vmem>>, vector<4x1xf32>
    %243 = vector.extract_strided_slice %220 {offsets = [0, 3, 0], sizes = [2, 1, 256], strides = [1, 1, 1]} : vector<2x4x256xf32> to vector<2x1x256xf32>
    %244 = vector.shape_cast %242 : vector<4x1xf32> to vector<1x4x1xf32>
    %245 = vector.broadcast %244 : vector<1x4x1xf32> to vector<2x4x256xf32>
    %246 = vector.broadcast %243 : vector<2x1x256xf32> to vector<2x4x256xf32>
    %247 = arith.mulf %245, %246 : vector<2x4x256xf32>
    %248 = arith.addf %241, %247 : vector<2x4x256xf32>
    %c0_67 = arith.constant 0 : index
    %c0_68 = arith.constant 0 : index
    %c33 = arith.constant 33 : index
    %249 = vector.load %arg8[%c0_67, %c0_68, %c33] : memref<2x4x290xf32, #tpu.memory_space<vmem>>, vector<2x4x256xf32>
    %c0_69 = arith.constant 0 : index
    %c28 = arith.constant 28 : index
    %250 = vector.load %arg1[%c0_69, %c28] : memref<4x36xf32, #tpu.memory_space<vmem>>, vector<4x1xf32>
    %251 = vector.extract_strided_slice %249 {offsets = [0, 0, 0], sizes = [2, 1, 256], strides = [1, 1, 1]} : vector<2x4x256xf32> to vector<2x1x256xf32>
    %252 = vector.shape_cast %250 : vector<4x1xf32> to vector<1x4x1xf32>
    %253 = vector.broadcast %252 : vector<1x4x1xf32> to vector<2x4x256xf32>
    %254 = vector.broadcast %251 : vector<2x1x256xf32> to vector<2x4x256xf32>
    %255 = arith.mulf %253, %254 : vector<2x4x256xf32>
    %256 = arith.addf %248, %255 : vector<2x4x256xf32>
    %c0_70 = arith.constant 0 : index
    %c29 = arith.constant 29 : index
    %257 = vector.load %arg1[%c0_70, %c29] : memref<4x36xf32, #tpu.memory_space<vmem>>, vector<4x1xf32>
    %258 = vector.extract_strided_slice %249 {offsets = [0, 1, 0], sizes = [2, 1, 256], strides = [1, 1, 1]} : vector<2x4x256xf32> to vector<2x1x256xf32>
    %259 = vector.shape_cast %257 : vector<4x1xf32> to vector<1x4x1xf32>
    %260 = vector.broadcast %259 : vector<1x4x1xf32> to vector<2x4x256xf32>
    %261 = vector.broadcast %258 : vector<2x1x256xf32> to vector<2x4x256xf32>
    %262 = arith.mulf %260, %261 : vector<2x4x256xf32>
    %263 = arith.addf %256, %262 : vector<2x4x256xf32>
    %c0_71 = arith.constant 0 : index
    %c30 = arith.constant 30 : index
    %264 = vector.load %arg1[%c0_71, %c30] : memref<4x36xf32, #tpu.memory_space<vmem>>, vector<4x1xf32>
    %265 = vector.extract_strided_slice %249 {offsets = [0, 2, 0], sizes = [2, 1, 256], strides = [1, 1, 1]} : vector<2x4x256xf32> to vector<2x1x256xf32>
    %266 = vector.shape_cast %264 : vector<4x1xf32> to vector<1x4x1xf32>
    %267 = vector.broadcast %266 : vector<1x4x1xf32> to vector<2x4x256xf32>
    %268 = vector.broadcast %265 : vector<2x1x256xf32> to vector<2x4x256xf32>
    %269 = arith.mulf %267, %268 : vector<2x4x256xf32>
    %270 = arith.addf %263, %269 : vector<2x4x256xf32>
    %c0_72 = arith.constant 0 : index
    %c31 = arith.constant 31 : index
    %271 = vector.load %arg1[%c0_72, %c31] : memref<4x36xf32, #tpu.memory_space<vmem>>, vector<4x1xf32>
    %272 = vector.extract_strided_slice %249 {offsets = [0, 3, 0], sizes = [2, 1, 256], strides = [1, 1, 1]} : vector<2x4x256xf32> to vector<2x1x256xf32>
    %273 = vector.shape_cast %271 : vector<4x1xf32> to vector<1x4x1xf32>
    %274 = vector.broadcast %273 : vector<1x4x1xf32> to vector<2x4x256xf32>
    %275 = vector.broadcast %272 : vector<2x1x256xf32> to vector<2x4x256xf32>
    %276 = arith.mulf %274, %275 : vector<2x4x256xf32>
    %277 = arith.addf %270, %276 : vector<2x4x256xf32>
    %c0_73 = arith.constant 0 : index
    %c0_74 = arith.constant 0 : index
    %c34 = arith.constant 34 : index
    %278 = vector.load %arg8[%c0_73, %c0_74, %c34] : memref<2x4x290xf32, #tpu.memory_space<vmem>>, vector<2x4x256xf32>
    %cst_75 = arith.constant 0.000000e+00 : f32
    %279 = vector.shape_cast %26 : vector<1x1x256xi1> to vector<1x1x256xi1>
    %280 = vector.broadcast %279 : vector<1x1x256xi1> to vector<2x4x256xi1>
    %281 = vector.broadcast %cst_75 : f32 to vector<2x4x256xf32>
    %282 = arith.select %280, %278, %281 : vector<2x4x256xi1>, vector<2x4x256xf32>
    %c0_76 = arith.constant 0 : index
    %c32_77 = arith.constant 32 : index
    %283 = vector.load %arg1[%c0_76, %c32_77] : memref<4x36xf32, #tpu.memory_space<vmem>>, vector<4x1xf32>
    %284 = vector.extract_strided_slice %282 {offsets = [0, 0, 0], sizes = [2, 1, 256], strides = [1, 1, 1]} : vector<2x4x256xf32> to vector<2x1x256xf32>
    %285 = vector.shape_cast %283 : vector<4x1xf32> to vector<1x4x1xf32>
    %286 = vector.broadcast %285 : vector<1x4x1xf32> to vector<2x4x256xf32>
    %287 = vector.broadcast %284 : vector<2x1x256xf32> to vector<2x4x256xf32>
    %288 = arith.mulf %286, %287 : vector<2x4x256xf32>
    %289 = arith.addf %277, %288 : vector<2x4x256xf32>
    %c0_78 = arith.constant 0 : index
    %c33_79 = arith.constant 33 : index
    %290 = vector.load %arg1[%c0_78, %c33_79] : memref<4x36xf32, #tpu.memory_space<vmem>>, vector<4x1xf32>
    %291 = vector.extract_strided_slice %282 {offsets = [0, 1, 0], sizes = [2, 1, 256], strides = [1, 1, 1]} : vector<2x4x256xf32> to vector<2x1x256xf32>
    %292 = vector.shape_cast %290 : vector<4x1xf32> to vector<1x4x1xf32>
    %293 = vector.broadcast %292 : vector<1x4x1xf32> to vector<2x4x256xf32>
    %294 = vector.broadcast %291 : vector<2x1x256xf32> to vector<2x4x256xf32>
    %295 = arith.mulf %293, %294 : vector<2x4x256xf32>
    %296 = arith.addf %289, %295 : vector<2x4x256xf32>
    %c0_80 = arith.constant 0 : index
    %c34_81 = arith.constant 34 : index
    %297 = vector.load %arg1[%c0_80, %c34_81] : memref<4x36xf32, #tpu.memory_space<vmem>>, vector<4x1xf32>
    %298 = vector.extract_strided_slice %282 {offsets = [0, 2, 0], sizes = [2, 1, 256], strides = [1, 1, 1]} : vector<2x4x256xf32> to vector<2x1x256xf32>
    %299 = vector.shape_cast %297 : vector<4x1xf32> to vector<1x4x1xf32>
    %300 = vector.broadcast %299 : vector<1x4x1xf32> to vector<2x4x256xf32>
    %301 = vector.broadcast %298 : vector<2x1x256xf32> to vector<2x4x256xf32>
    %302 = arith.mulf %300, %301 : vector<2x4x256xf32>
    %303 = arith.addf %296, %302 : vector<2x4x256xf32>
    %c0_82 = arith.constant 0 : index
    %c35 = arith.constant 35 : index
    %304 = vector.load %arg1[%c0_82, %c35] : memref<4x36xf32, #tpu.memory_space<vmem>>, vector<4x1xf32>
    %305 = vector.extract_strided_slice %282 {offsets = [0, 3, 0], sizes = [2, 1, 256], strides = [1, 1, 1]} : vector<2x4x256xf32> to vector<2x1x256xf32>
    %306 = vector.shape_cast %304 : vector<4x1xf32> to vector<1x4x1xf32>
    %307 = vector.broadcast %306 : vector<1x4x1xf32> to vector<2x4x256xf32>
    %308 = vector.broadcast %305 : vector<2x1x256xf32> to vector<2x4x256xf32>
    %309 = arith.mulf %307, %308 : vector<2x4x256xf32>
    %310 = arith.addf %303, %309 : vector<2x4x256xf32>
    %c0_83 = arith.constant 0 : index
    %c0_84 = arith.constant 0 : index
    %311 = vector.load %arg2[%c0_83, %c0_84] : memref<4x1xf32, #tpu.memory_space<vmem>>, vector<4x1xf32>
    %c0_85 = arith.constant 0 : index
    %c0_86 = arith.constant 0 : index
    %312 = vector.load %arg3[%c0_85, %c0_86] : memref<4x1xf32, #tpu.memory_space<vmem>>, vector<4x1xf32>
    %cst_87 = arith.constant dense<0.000000e+00> : vector<2x4xf32>
    %313 = vector.multi_reduction <add>, %310, %cst_87 [2] : vector<2x4x256xf32> to vector<2x4xf32>
    %314 = vector.shape_cast %313 : vector<2x4xf32> to vector<2x4x1xf32>
    %cst_88 = arith.constant dense<0.000000e+00> : vector<4x1xf32>
    %315 = vector.multi_reduction <add>, %314, %cst_88 [0] : vector<2x4x1xf32> to vector<4x1xf32>
    %316 = vector.shape_cast %315 : vector<4x1xf32> to vector<1x4x1xf32>
    %317 = arith.mulf %310, %310 : vector<2x4x256xf32>
    %cst_89 = arith.constant dense<0.000000e+00> : vector<2x4xf32>
    %318 = vector.multi_reduction <add>, %317, %cst_89 [2] : vector<2x4x256xf32> to vector<2x4xf32>
    %319 = vector.shape_cast %318 : vector<2x4xf32> to vector<2x4x1xf32>
    %cst_90 = arith.constant dense<0.000000e+00> : vector<4x1xf32>
    %320 = vector.multi_reduction <add>, %319, %cst_90 [0] : vector<2x4x1xf32> to vector<4x1xf32>
    %321 = vector.shape_cast %320 : vector<4x1xf32> to vector<1x4x1xf32>
    %cst_91 = arith.constant 0.001953125 : f32
    %322 = vector.broadcast %cst_91 : f32 to vector<1x4x1xf32>
    %323 = arith.mulf %316, %322 : vector<1x4x1xf32>
    %cst_92 = arith.constant 0.001953125 : f32
    %324 = vector.broadcast %cst_92 : f32 to vector<1x4x1xf32>
    %325 = arith.mulf %321, %324 : vector<1x4x1xf32>
    %326 = arith.mulf %323, %323 : vector<1x4x1xf32>
    %327 = arith.subf %325, %326 : vector<1x4x1xf32>
    %cst_93 = arith.constant 0.000000e+00 : f32
    %328 = vector.broadcast %cst_93 : f32 to vector<1x4x1xf32>
    %329 = arith.maximumf %327, %328 : vector<1x4x1xf32>
    %cst_94 = arith.constant 9.99999974E-6 : f32
    %330 = vector.broadcast %cst_94 : f32 to vector<1x4x1xf32>
    %331 = arith.addf %329, %330 : vector<1x4x1xf32>
    %332 = math.rsqrt %331 : vector<1x4x1xf32>
    %333 = vector.shape_cast %311 : vector<4x1xf32> to vector<1x4x1xf32>
    %334 = arith.mulf %333, %332 : vector<1x4x1xf32>
    %335 = arith.mulf %323, %334 : vector<1x4x1xf32>
    %336 = vector.shape_cast %312 : vector<4x1xf32> to vector<1x4x1xf32>
    %337 = arith.subf %336, %335 : vector<1x4x1xf32>
    %338 = vector.broadcast %334 : vector<1x4x1xf32> to vector<2x4x256xf32>
    %339 = arith.mulf %310, %338 : vector<2x4x256xf32>
    %340 = vector.broadcast %337 : vector<1x4x1xf32> to vector<2x4x256xf32>
    %341 = arith.addf %339, %340 : vector<2x4x256xf32>
    %cst_95 = arith.constant 0.000000e+00 : f32
    %342 = vector.broadcast %cst_95 : f32 to vector<2x4x256xf32>
    %343 = arith.maximumf %341, %342 : vector<2x4x256xf32>
    %c0_96 = arith.constant 0 : index
    %c0_97 = arith.constant 0 : index
    %344 = vector.load %arg4[%c0_96, %c0_97] : memref<4x4xf32, #tpu.memory_space<vmem>>, vector<4x1xf32>
    %345 = vector.extract_strided_slice %343 {offsets = [0, 0, 0], sizes = [2, 1, 256], strides = [1, 1, 1]} : vector<2x4x256xf32> to vector<2x1x256xf32>
    %346 = vector.shape_cast %344 : vector<4x1xf32> to vector<1x4x1xf32>
    %347 = vector.broadcast %346 : vector<1x4x1xf32> to vector<2x4x256xf32>
    %348 = vector.broadcast %345 : vector<2x1x256xf32> to vector<2x4x256xf32>
    %349 = arith.mulf %347, %348 : vector<2x4x256xf32>
    %c0_98 = arith.constant 0 : index
    %c1_99 = arith.constant 1 : index
    %350 = vector.load %arg4[%c0_98, %c1_99] : memref<4x4xf32, #tpu.memory_space<vmem>>, vector<4x1xf32>
    %351 = vector.extract_strided_slice %343 {offsets = [0, 1, 0], sizes = [2, 1, 256], strides = [1, 1, 1]} : vector<2x4x256xf32> to vector<2x1x256xf32>
    %352 = vector.shape_cast %350 : vector<4x1xf32> to vector<1x4x1xf32>
    %353 = vector.broadcast %352 : vector<1x4x1xf32> to vector<2x4x256xf32>
    %354 = vector.broadcast %351 : vector<2x1x256xf32> to vector<2x4x256xf32>
    %355 = arith.mulf %353, %354 : vector<2x4x256xf32>
    %356 = arith.addf %349, %355 : vector<2x4x256xf32>
    %c0_100 = arith.constant 0 : index
    %c2_101 = arith.constant 2 : index
    %357 = vector.load %arg4[%c0_100, %c2_101] : memref<4x4xf32, #tpu.memory_space<vmem>>, vector<4x1xf32>
    %358 = vector.extract_strided_slice %343 {offsets = [0, 2, 0], sizes = [2, 1, 256], strides = [1, 1, 1]} : vector<2x4x256xf32> to vector<2x1x256xf32>
    %359 = vector.shape_cast %357 : vector<4x1xf32> to vector<1x4x1xf32>
    %360 = vector.broadcast %359 : vector<1x4x1xf32> to vector<2x4x256xf32>
    %361 = vector.broadcast %358 : vector<2x1x256xf32> to vector<2x4x256xf32>
    %362 = arith.mulf %360, %361 : vector<2x4x256xf32>
    %363 = arith.addf %356, %362 : vector<2x4x256xf32>
    %c0_102 = arith.constant 0 : index
    %c3_103 = arith.constant 3 : index
    %364 = vector.load %arg4[%c0_102, %c3_103] : memref<4x4xf32, #tpu.memory_space<vmem>>, vector<4x1xf32>
    %365 = vector.extract_strided_slice %343 {offsets = [0, 3, 0], sizes = [2, 1, 256], strides = [1, 1, 1]} : vector<2x4x256xf32> to vector<2x1x256xf32>
    %366 = vector.shape_cast %364 : vector<4x1xf32> to vector<1x4x1xf32>
    %367 = vector.broadcast %366 : vector<1x4x1xf32> to vector<2x4x256xf32>
    %368 = vector.broadcast %365 : vector<2x1x256xf32> to vector<2x4x256xf32>
    %369 = arith.mulf %367, %368 : vector<2x4x256xf32>
    %370 = arith.addf %363, %369 : vector<2x4x256xf32>
    %c0_104 = arith.constant 0 : index
    %c0_105 = arith.constant 0 : index
    %371 = vector.load %arg5[%c0_104, %c0_105] : memref<4x1xf32, #tpu.memory_space<vmem>>, vector<4x1xf32>
    %c0_106 = arith.constant 0 : index
    %c0_107 = arith.constant 0 : index
    %372 = vector.load %arg6[%c0_106, %c0_107] : memref<4x1xf32, #tpu.memory_space<vmem>>, vector<4x1xf32>
    %cst_108 = arith.constant dense<0.000000e+00> : vector<2x4xf32>
    %373 = vector.multi_reduction <add>, %370, %cst_108 [2] : vector<2x4x256xf32> to vector<2x4xf32>
    %374 = vector.shape_cast %373 : vector<2x4xf32> to vector<2x4x1xf32>
    %cst_109 = arith.constant dense<0.000000e+00> : vector<4x1xf32>
    %375 = vector.multi_reduction <add>, %374, %cst_109 [0] : vector<2x4x1xf32> to vector<4x1xf32>
    %376 = vector.shape_cast %375 : vector<4x1xf32> to vector<1x4x1xf32>
    %377 = arith.mulf %370, %370 : vector<2x4x256xf32>
    %cst_110 = arith.constant dense<0.000000e+00> : vector<2x4xf32>
    %378 = vector.multi_reduction <add>, %377, %cst_110 [2] : vector<2x4x256xf32> to vector<2x4xf32>
    %379 = vector.shape_cast %378 : vector<2x4xf32> to vector<2x4x1xf32>
    %cst_111 = arith.constant dense<0.000000e+00> : vector<4x1xf32>
    %380 = vector.multi_reduction <add>, %379, %cst_111 [0] : vector<2x4x1xf32> to vector<4x1xf32>
    %381 = vector.shape_cast %380 : vector<4x1xf32> to vector<1x4x1xf32>
    %cst_112 = arith.constant 0.001953125 : f32
    %382 = vector.broadcast %cst_112 : f32 to vector<1x4x1xf32>
    %383 = arith.mulf %376, %382 : vector<1x4x1xf32>
    %cst_113 = arith.constant 0.001953125 : f32
    %384 = vector.broadcast %cst_113 : f32 to vector<1x4x1xf32>
    %385 = arith.mulf %381, %384 : vector<1x4x1xf32>
    %386 = arith.mulf %383, %383 : vector<1x4x1xf32>
    %387 = arith.subf %385, %386 : vector<1x4x1xf32>
    %cst_114 = arith.constant 0.000000e+00 : f32
    %388 = vector.broadcast %cst_114 : f32 to vector<1x4x1xf32>
    %389 = arith.maximumf %387, %388 : vector<1x4x1xf32>
    %cst_115 = arith.constant 9.99999974E-6 : f32
    %390 = vector.broadcast %cst_115 : f32 to vector<1x4x1xf32>
    %391 = arith.addf %389, %390 : vector<1x4x1xf32>
    %392 = math.rsqrt %391 : vector<1x4x1xf32>
    %393 = vector.shape_cast %371 : vector<4x1xf32> to vector<1x4x1xf32>
    %394 = arith.mulf %393, %392 : vector<1x4x1xf32>
    %395 = arith.mulf %383, %394 : vector<1x4x1xf32>
    %396 = vector.shape_cast %372 : vector<4x1xf32> to vector<1x4x1xf32>
    %397 = arith.subf %396, %395 : vector<1x4x1xf32>
    %398 = vector.broadcast %394 : vector<1x4x1xf32> to vector<2x4x256xf32>
    %399 = arith.mulf %370, %398 : vector<2x4x256xf32>
    %400 = arith.addf %0, %399 : vector<2x4x256xf32>
    %401 = vector.broadcast %397 : vector<1x4x1xf32> to vector<2x4x256xf32>
    %402 = arith.addf %400, %401 : vector<2x4x256xf32>
    %c0_116 = arith.constant 0 : index
    %c0_117 = arith.constant 0 : index
    %c0_118 = arith.constant 0 : index
    %403 = vector.load %arg7[%c0_116, %c0_117, %c0_118] : memref<2x4x256xf32, #tpu.memory_space<vmem>>, vector<2x4x256xf32>
    tpu.vector_store %arg7[%c0_116, %c0_117, %c0_118], %402 {strides = array<i32>} : memref<2x4x256xf32, #tpu.memory_space<vmem>>, vector<2x4x256xf32>,
    return
  }
}

</mosaic_0001>

<llo_original>
// kernel: tpu_custom_call.1
$region0: #{tpu_custom_call.1}
  #allocation0 [shape = 'u32[]', space=smem, size = 0x4, offset = 0x4, fixed_abs, tag = 'smem constant byte address 0x4 - core index']
  #allocation1 [shape = 'u32[144,128]{1,0:T(1,128)}', space=vmem, size = 0x12000, scoped, tag = 'internal scratch']
  #allocation2 [shape = 'f32[2,4,290]{2,1,0:T(4,128)}', space=vmem, size = 0x3000, scoped, tag = 'scratch operand']
  %s0 = inlined_call_operand.vmem [shape: f32[2,4,256], index: 0, kind: input, shape index: {}]
  %s1 = inlined_call_operand.vmem [shape: f32[4,36], index: 1, kind: input, shape index: {}]
  %s2 = inlined_call_operand.vmem [shape: f32[4,1], index: 2, kind: input, shape index: {}]
  %s3 = inlined_call_operand.vmem [shape: f32[4,1], index: 3, kind: input, shape index: {}]
  %s4 = inlined_call_operand.vmem [shape: f32[4,4], index: 4, kind: input, shape index: {}]
  %s5 = inlined_call_operand.vmem [shape: f32[4,1], index: 5, kind: input, shape index: {}]
  %s6 = inlined_call_operand.vmem [shape: f32[4,1], index: 6, kind: input, shape index: {}]
  %s7 = inlined_call_operand.hbm [shape: f32[2,4,256], index: 7, kind: output, shape index: {}]
  %s8 = sld [smem:[#allocation0]]
  $region38: #{tpu_custom_call.1} parent=0
    _
  %s10 = ssub.s32 1, %s8
  %s11 = scalar_select 0, %s10, %s8
  $region1: #{tpu_custom_call.1} parent=0
    #allocation3 [shape = 'u8[8192]{0}', space=vmem, size = 0x2000, scoped, tag = 'output window, operand 0, single buffered']
    #allocation4 [shape = 's32[1]{0}', space=sflag, size = 0x4, scoped, tag = 'scoped memory for tpu_custom_call.1']
    %12 = vsyncpa [#allocation4], 0
    // Predicated region
    $region2: #{tpu_custom_call.1} parent=1 // pred_check
      _
    $region3: #{tpu_custom_call.1} parent=1 // pred_check_branch
      %14 = sbr.rel (0) target = $region5
    $region4: #{tpu_custom_call.1} parent=1 // pred_region
      _
    $region5: #{tpu_custom_call.1} parent=1 // pred_fallthru
      _
    // Predicated region
    $region6: #{tpu_custom_call.1} parent=1 // pred_check
      _
    $region7: #{tpu_custom_call.1} parent=1 // pred_check_branch
      %16 = sbr.rel (0) target = $region9
    $region8: #{tpu_custom_call.1} parent=1 // pred_region
      _
    $region9: #{tpu_custom_call.1} parent=1 // pred_fallthru
      _
    // Predicated region
    $region10: #{tpu_custom_call.1} parent=1 // pred_check
      _
    $region11: #{tpu_custom_call.1} parent=1 // pred_check_branch
      %18 = sbr.rel (0) target = $region13
    $region12: #{tpu_custom_call.1} parent=1 // pred_region
      _
    $region13: #{tpu_custom_call.1} parent=1 // pred_fallthru
      _
    // Predicated region
    $region14: #{tpu_custom_call.1} parent=1 // pred_check
      _
    $region15: #{tpu_custom_call.1} parent=1 // pred_check_branch
      %20 = sbr.rel (0) target = $region17
    $region16: #{tpu_custom_call.1} parent=1 // pred_region
      _
    $region17: #{tpu_custom_call.1} parent=1 // pred_fallthru
      _
    // Predicated region
    $region18: #{tpu_custom_call.1} parent=1 // pred_check
      _
    $region19: #{tpu_custom_call.1} parent=1 // pred_check_branch
      %22 = sbr.rel (0) target = $region21
    $region20: #{tpu_custom_call.1} parent=1 // pred_region
      _
    $region21: #{tpu_custom_call.1} parent=1 // pred_fallthru
      _
    // Predicated region
    $region22: #{tpu_custom_call.1} parent=1 // pred_check
      _
    $region23: #{tpu_custom_call.1} parent=1 // pred_check_branch
      %24 = sbr.rel (0) target = $region25
    $region24: #{tpu_custom_call.1} parent=1 // pred_region
      _
    $region25: #{tpu_custom_call.1} parent=1 // pred_fallthru
      _
    // Predicated region
    $region26: #{tpu_custom_call.1} parent=1 // pred_check
      _
    $region27: #{tpu_custom_call.1} parent=1 // pred_check_branch
      %26 = sbr.rel (0) target = $region29
    $region28: #{tpu_custom_call.1} parent=1 // pred_region
      _
    $region29: #{tpu_custom_call.1} parent=1 // pred_fallthru
      _
    %v27 = vld [vmem:[%s0] sm:$0xff]
    %v28 = vld [vmem:[%s0 + $0x8] sm:$0xff]
    %v29 = vmax.f32 %v27, 0.0
    %v30 = vmax.f32 %v28, 0.0
    %31 = vst [vmem:[#allocation2] sm:$0xff] 0.0
    %vm32 = vcmask 273408
    %33 = vst.msk [vmem:[#allocation2 + $0x8] sm:$0xf] %vm32, 0.0
    %34 = vst [vmem:[#allocation2 + $0xc] sm:$0xff] 0.0
    %35 = vst.msk [vmem:[#allocation2 + $0x14] sm:$0xf] %vm32, 0.0
    %38 = vrot.lane.b32.xlu0 %v29, 17
    %v39 = vpop.permute.xlu0 %38
    %40 = vrot.lane.b32.xlu0 %v30, 17
    %v41 = vpop.permute.xlu0 %40
    %v42 = vrot.slane %v39, 4
    %v43 = vrot.slane %v41, 4
    %vm44 = vcmask 138240
    %v45 = vsel %vm44, %v42, %v39
    %v46 = vsel %vm44, %v43, %v41
    %vm51 = vcmask 1043592
    %vm52 = vcmask 1047556
    %vm53 = vmor %vm52, %vm51
    %54 = vst.msk [vmem:[#allocation2] sm:$0xff] %vm53, %v45
    %vm55 = vcmask 134144
    %56 = vst.msk [vmem:[#allocation2 + $0x8] sm:$0xf] %vm55, %v42
    %57 = vst.msk [vmem:[#allocation2 + $0xc] sm:$0xff] %vm53, %v46
    %58 = vst.msk [vmem:[#allocation2 + $0x14] sm:$0xf] %vm55, %v43
    %v59 = vlaneseq
    %v60 = vand.u32 %v59, 127
    %v61 = vadd.s32 %v60, 128
    %vm62 = vcmp.lt.s32.totalorder %v60, 0
    %v63 = vsub.s32 0, %v60
    %v64 = vsel %vm62, %v63, %v60
    %v65 = vshrl.u32 %v64, 4
    %v66 = vand.u32 %v64, 15
    %v67 = vsub.s32 0, %v66
    %v68 = vsel %vm62, %v67, %v66
    %vm69 = vcmp.lt.s32.totalorder %v61, 0
    %v70 = vsub.s32 0, %v61
    %v71 = vsel %vm69, %v70, %v61
    %v72 = vshrl.u32 %v71, 4
    %v73 = vand.u32 %v71, 15
    %v74 = vsub.s32 0, %v73
    %v75 = vsel %vm69, %v74, %v73
    %vm76 = vcmp.ne.s32.totalorder %v68, 0
    %vm77 = vcmp.ne.s32.totalorder %v75, 0
    %vm78 = vcmp.lt.s32.totalorder %v68, 0
    %vm79 = vcmp.lt.s32.totalorder %v75, 0
    %vm80 = vmand %vm78, %vm76
    %vm81 = vmand %vm79, %vm77
    %v82 = vadd.s32 %v68, 16
    %v83 = vadd.s32 %v75, 16
    %v84 = vsel %vm80, %v82, %v68
    %v85 = vsel %vm81, %v83, %v75
    %vm86 = vcmp.ge.s32.totalorder %v84, 1
    %vm87 = vcmp.ge.s32.totalorder %v85, 1
    %vm88 = vcmp.le.s32.totalorder %v84, 14
    %vm89 = vcmp.le.s32.totalorder %v85, 14
    %v90 = vld [vmem:[#allocation2] sm:$0xff]
    %v91 = vld [vmem:[#allocation2 + $0xc] sm:$0xff]
    %v92 = vsel %vm86, 1, 0
    %v93 = vsel %vm87, 1, 0
    %vm94 = vcmp.eq.s32.totalorder %v92, 1
    %vm95 = vcmp.eq.s32.totalorder %v93, 1
    %v98 = vcombine.high %v90, %v90
    %v99 = vcombine.high %v91, %v91
    %v102 = vsel %vm94, %v90, 0.0
    %v103 = vsel %vm95, %v98, 0.0
    %v104 = vsel %vm94, %v91, 0.0
    %v105 = vsel %vm95, %v99, 0.0
    %v106 = vld [vmem:[%s1] sm:$0xf]
    %108 = vset.pattern.permute.xlu0 0
    %109 = vperm.xlu0 %108, %v106
    %v110 = vpop.permute.xlu0 %109
    %v112 = vlaneseq
    %v113 = vshrl.u32 %v112, 7
    %v114 = vsub.s32 0, %v113
    %v115 = vrot.slane %v102, %v114
    %v116 = vlaneseq
    %v117 = vshrl.u32 %v116, 7
    %v118 = vsub.s32 0, %v117
    %v119 = vrot.slane %v103, %v118
    %v120 = vlaneseq
    %v121 = vshrl.u32 %v120, 7
    %v122 = vsub.s32 0, %v121
    %v123 = vrot.slane %v104, %v122
    %v124 = vlaneseq
    %v125 = vshrl.u32 %v124, 7
    %v126 = vsub.s32 0, %v125
    %v127 = vrot.slane %v105, %v126
    %v128 = vmul.f32 %v110, %v115
    %v129 = vmul.f32 %v110, %v119
    %v130 = vmul.f32 %v110, %v123
    %v131 = vmul.f32 %v110, %v127
    %132 = vset.pattern.permute.xlu0 1
    %133 = vperm.xlu0 %132, %v106
    %v134 = vpop.permute.xlu0 %133
    %v136 = vlaneseq
    %v137 = vshrl.u32 %v136, 7
    %v138 = vsub.s32 1, %v137
    %v139 = vrot.slane %v102, %v138
    %v140 = vlaneseq
    %v141 = vshrl.u32 %v140, 7
    %v142 = vsub.s32 1, %v141
    %v143 = vrot.slane %v103, %v142
    %v144 = vlaneseq
    %v145 = vshrl.u32 %v144, 7
    %v146 = vsub.s32 1, %v145
    %v147 = vrot.slane %v104, %v146
    %v148 = vlaneseq
    %v149 = vshrl.u32 %v148, 7
    %v150 = vsub.s32 1, %v149
    %v151 = vrot.slane %v105, %v150
    %v152 = vmul.f32 %v134, %v139
    %v153 = vmul.f32 %v134, %v143
    %v154 = vmul.f32 %v134, %v147
    %v155 = vmul.f32 %v134, %v151
    %v156 = vadd.f32 %v128, %v152
    %v157 = vadd.f32 %v129, %v153
    %v158 = vadd.f32 %v130, %v154
    %v159 = vadd.f32 %v131, %v155
    %160 = vset.pattern.permute.xlu0 2
    %161 = vperm.xlu0 %160, %v106
    %v162 = vpop.permute.xlu0 %161
    %v164 = vlaneseq
    %v165 = vshrl.u32 %v164, 7
    %v166 = vsub.s32 2, %v165
    %v167 = vrot.slane %v102, %v166
    %v168 = vlaneseq
    %v169 = vshrl.u32 %v168, 7
    %v170 = vsub.s32 2, %v169
    %v171 = vrot.slane %v103, %v170
    %v172 = vlaneseq
    %v173 = vshrl.u32 %v172, 7
    %v174 = vsub.s32 2, %v173
    %v175 = vrot.slane %v104, %v174
    %v176 = vlaneseq
    %v177 = vshrl.u32 %v176, 7
    %v178 = vsub.s32 2, %v177
    %v179 = vrot.slane %v105, %v178
    %v180 = vmul.f32 %v162, %v167
    %v181 = vmul.f32 %v162, %v171
    %v182 = vmul.f32 %v162, %v175
    %v183 = vmul.f32 %v162, %v179
    %v184 = vadd.f32 %v156, %v180
    %v185 = vadd.f32 %v157, %v181
    %v186 = vadd.f32 %v158, %v182
    %v187 = vadd.f32 %v159, %v183
    %188 = vset.pattern.permute.xlu0 3
    %189 = vperm.xlu0 %188, %v106
    %v190 = vpop.permute.xlu0 %189
    %v192 = vlaneseq
    %v193 = vshrl.u32 %v192, 7
    %v194 = vsub.s32 3, %v193
    %v195 = vrot.slane %v102, %v194
    %v196 = vlaneseq
    %v197 = vshrl.u32 %v196, 7
    %v198 = vsub.s32 3, %v197
    %v199 = vrot.slane %v103, %v198
    %v200 = vlaneseq
    %v201 = vshrl.u32 %v200, 7
    %v202 = vsub.s32 3, %v201
    %v203 = vrot.slane %v104, %v202
    %v204 = vlaneseq
    %v205 = vshrl.u32 %v204, 7
    %v206 = vsub.s32 3, %v205
    %v207 = vrot.slane %v105, %v206
    %v208 = vmul.f32 %v190, %v195
    %v209 = vmul.f32 %v190, %v199
    %v210 = vmul.f32 %v190, %v203
    %v211 = vmul.f32 %v190, %v207
    %v212 = vadd.f32 %v184, %v208
    %v213 = vadd.f32 %v185, %v209
    %v214 = vadd.f32 %v186, %v210
    %v215 = vadd.f32 %v187, %v211
    %v216 = vld [vmem:[#allocation2] sm:$0xff]
    %v217 = vld [vmem:[#allocation2 + $0x8] sm:$0xf]
    %v218 = vld [vmem:[#allocation2 + $0xc] sm:$0xff]
    %v219 = vld [vmem:[#allocation2 + $0x14] sm:$0xf]
    %220 = vset.pattern.permute.xlu0 4
    %221 = vperm.xlu0 %220, %v106
    %v222 = vpop.permute.xlu0 %221
    %v228 = vlaneseq
    %v229 = vshrl.u32 %v228, 7
    %v230 = vsub.s32 0, %v229
    %v231 = vrot.slane %v216, %v230
    %v232 = vlaneseq
    %v233 = vshrl.u32 %v232, 7
    %v234 = vsub.s32 4, %v233
    %v235 = vrot.slane %v216, %v234
    %v236 = vlaneseq
    %v237 = vshrl.u32 %v236, 7
    %v238 = vsub.s32 0, %v237
    %v239 = vrot.slane %v217, %v238
    %v240 = vlaneseq
    %v241 = vshrl.u32 %v240, 7
    %v242 = vsub.s32 0, %v241
    %v243 = vrot.slane %v218, %v242
    %v244 = vlaneseq
    %v245 = vshrl.u32 %v244, 7
    %v246 = vsub.s32 4, %v245
    %v247 = vrot.slane %v218, %v246
    %v248 = vlaneseq
    %v249 = vshrl.u32 %v248, 7
    %v250 = vsub.s32 0, %v249
    %v251 = vrot.slane %v219, %v250
    %v258 = vlaneseq
    %v259 = vshrl.u32 %v258, 7
    %v260 = vsub.s32 0, %v259
    %v261 = vrot.slane %v231, %v260
    %v262 = vlaneseq
    %v263 = vshrl.u32 %v262, 7
    %v264 = vsub.s32 0, %v263
    %v265 = vrot.slane %v235, %v264
    %v266 = vlaneseq
    %v267 = vshrl.u32 %v266, 7
    %v268 = vsub.s32 0, %v267
    %v269 = vrot.slane %v239, %v268
    %v270 = vlaneseq
    %v271 = vshrl.u32 %v270, 7
    %v272 = vsub.s32 0, %v271
    %v273 = vrot.slane %v243, %v272
    %v274 = vlaneseq
    %v275 = vshrl.u32 %v274, 7
    %v276 = vsub.s32 0, %v275
    %v277 = vrot.slane %v247, %v276
    %v278 = vlaneseq
    %v279 = vshrl.u32 %v278, 7
    %v280 = vsub.s32 0, %v279
    %v281 = vrot.slane %v251, %v280
    %v282 = vmul.f32 %v222, %v261
    %v283 = vmul.f32 %v222, %v265
    %v284 = vmul.f32 %v222, %v269
    %v285 = vmul.f32 %v222, %v273
    %v286 = vmul.f32 %v222, %v277
    %v287 = vmul.f32 %v222, %v281
    %294 = vrot.lane.b32.xlu0 %v282, 127
    %v295 = vpop.permute.xlu0 %294
    %296 = vrot.lane.b32.xlu0 %v283, 127
    %v297 = vpop.permute.xlu0 %296
    %298 = vrot.lane.b32.xlu0 %v284, 127
    %v299 = vpop.permute.xlu0 %298
    %300 = vrot.lane.b32.xlu0 %v285, 127
    %v301 = vpop.permute.xlu0 %300
    %302 = vrot.lane.b32.xlu0 %v286, 127
    %v303 = vpop.permute.xlu0 %302
    %304 = vrot.lane.b32.xlu0 %v287, 127
    %v305 = vpop.permute.xlu0 %304
    %vm306 = vcmask 1039360
    %v307 = vsel %vm306, %v295, %v297
    %v308 = vsel %vm306, %v297, %v299
    %v309 = vsel %vm306, %v301, %v303
    %v310 = vsel %vm306, %v303, %v305
    %v315 = vadd.f32 %v212, %v307
    %v316 = vadd.f32 %v213, %v308
    %v317 = vadd.f32 %v214, %v309
    %v318 = vadd.f32 %v215, %v310
    %319 = vset.pattern.permute.xlu0 5
    %320 = vperm.xlu0 %319, %v106
    %v321 = vpop.permute.xlu0 %320
    %v323 = vlaneseq
    %v324 = vshrl.u32 %v323, 7
    %v325 = vsub.s32 1, %v324
    %v326 = vrot.slane %v216, %v325
    %v327 = vlaneseq
    %v328 = vshrl.u32 %v327, 7
    %v329 = vsub.s32 5, %v328
    %v330 = vrot.slane %v216, %v329
    %v331 = vlaneseq
    %v332 = vshrl.u32 %v331, 7
    %v333 = vsub.s32 1, %v332
    %v334 = vrot.slane %v217, %v333
    %v335 = vlaneseq
    %v336 = vshrl.u32 %v335, 7
    %v337 = vsub.s32 1, %v336
    %v338 = vrot.slane %v218, %v337
    %v339 = vlaneseq
    %v340 = vshrl.u32 %v339, 7
    %v341 = vsub.s32 5, %v340
    %v342 = vrot.slane %v218, %v341
    %v343 = vlaneseq
    %v344 = vshrl.u32 %v343, 7
    %v345 = vsub.s32 1, %v344
    %v346 = vrot.slane %v219, %v345
    %v353 = vlaneseq
    %v354 = vshrl.u32 %v353, 7
    %v355 = vsub.s32 1, %v354
    %v356 = vrot.slane %v326, %v355
    %v357 = vlaneseq
    %v358 = vshrl.u32 %v357, 7
    %v359 = vsub.s32 1, %v358
    %v360 = vrot.slane %v330, %v359
    %v361 = vlaneseq
    %v362 = vshrl.u32 %v361, 7
    %v363 = vsub.s32 1, %v362
    %v364 = vrot.slane %v334, %v363
    %v365 = vlaneseq
    %v366 = vshrl.u32 %v365, 7
    %v367 = vsub.s32 1, %v366
    %v368 = vrot.slane %v338, %v367
    %v369 = vlaneseq
    %v370 = vshrl.u32 %v369, 7
    %v371 = vsub.s32 1, %v370
    %v372 = vrot.slane %v342, %v371
    %v373 = vlaneseq
    %v374 = vshrl.u32 %v373, 7
    %v375 = vsub.s32 1, %v374
    %v376 = vrot.slane %v346, %v375
    %v377 = vmul.f32 %v321, %v356
    %v378 = vmul.f32 %v321, %v360
    %v379 = vmul.f32 %v321, %v364
    %v380 = vmul.f32 %v321, %v368
    %v381 = vmul.f32 %v321, %v372
    %v382 = vmul.f32 %v321, %v376
    %389 = vrot.lane.b32.xlu0 %v377, 127
    %v390 = vpop.permute.xlu0 %389
    %391 = vrot.lane.b32.xlu0 %v378, 127
    %v392 = vpop.permute.xlu0 %391
    %393 = vrot.lane.b32.xlu0 %v379, 127
    %v394 = vpop.permute.xlu0 %393
    %395 = vrot.lane.b32.xlu0 %v380, 127
    %v396 = vpop.permute.xlu0 %395
    %397 = vrot.lane.b32.xlu0 %v381, 127
    %v398 = vpop.permute.xlu0 %397
    %399 = vrot.lane.b32.xlu0 %v382, 127
    %v400 = vpop.permute.xlu0 %399
    %v401 = vsel %vm306, %v390, %v392
    %v402 = vsel %vm306, %v392, %v394
    %v403 = vsel %vm306, %v396, %v398
    %v404 = vsel %vm306, %v398, %v400
    %v409 = vadd.f32 %v315, %v401
    %v410 = vadd.f32 %v316, %v402
    %v411 = vadd.f32 %v317, %v403
    %v412 = vadd.f32 %v318, %v404
    %413 = vset.pattern.permute.xlu0 6
    %414 = vperm.xlu0 %413, %v106
    %v415 = vpop.permute.xlu0 %414
    %v417 = vlaneseq
    %v418 = vshrl.u32 %v417, 7
    %v419 = vsub.s32 2, %v418
    %v420 = vrot.slane %v216, %v419
    %v421 = vlaneseq
    %v422 = vshrl.u32 %v421, 7
    %v423 = vsub.s32 6, %v422
    %v424 = vrot.slane %v216, %v423
    %v425 = vlaneseq
    %v426 = vshrl.u32 %v425, 7
    %v427 = vsub.s32 2, %v426
    %v428 = vrot.slane %v217, %v427
    %v429 = vlaneseq
    %v430 = vshrl.u32 %v429, 7
    %v431 = vsub.s32 2, %v430
    %v432 = vrot.slane %v218, %v431
    %v433 = vlaneseq
    %v434 = vshrl.u32 %v433, 7
    %v435 = vsub.s32 6, %v434
    %v436 = vrot.slane %v218, %v435
    %v437 = vlaneseq
    %v438 = vshrl.u32 %v437, 7
    %v439 = vsub.s32 2, %v438
    %v440 = vrot.slane %v219, %v439
    %v447 = vlaneseq
    %v448 = vshrl.u32 %v447, 7
    %v449 = vsub.s32 2, %v448
    %v450 = vrot.slane %v420, %v449
    %v451 = vlaneseq
    %v452 = vshrl.u32 %v451, 7
    %v453 = vsub.s32 2, %v452
    %v454 = vrot.slane %v424, %v453
    %v455 = vlaneseq
    %v456 = vshrl.u32 %v455, 7
    %v457 = vsub.s32 2, %v456
    %v458 = vrot.slane %v428, %v457
    %v459 = vlaneseq
    %v460 = vshrl.u32 %v459, 7
    %v461 = vsub.s32 2, %v460
    %v462 = vrot.slane %v432, %v461
    %v463 = vlaneseq
    %v464 = vshrl.u32 %v463, 7
    %v465 = vsub.s32 2, %v464
    %v466 = vrot.slane %v436, %v465
    %v467 = vlaneseq
    %v468 = vshrl.u32 %v467, 7
    %v469 = vsub.s32 2, %v468
    %v470 = vrot.slane %v440, %v469
    %v471 = vmul.f32 %v415, %v450
    %v472 = vmul.f32 %v415, %v454
    %v473 = vmul.f32 %v415, %v458
    %v474 = vmul.f32 %v415, %v462
    %v475 = vmul.f32 %v415, %v466
    %v476 = vmul.f32 %v415, %v470
    %483 = vrot.lane.b32.xlu0 %v471, 127
    %v484 = vpop.permute.xlu0 %483
    %485 = vrot.lane.b32.xlu0 %v472, 127
    %v486 = vpop.permute.xlu0 %485
    %487 = vrot.lane.b32.xlu0 %v473, 127
    %v488 = vpop.permute.xlu0 %487
    %489 = vrot.lane.b32.xlu0 %v474, 127
    %v490 = vpop.permute.xlu0 %489
    %491 = vrot.lane.b32.xlu0 %v475, 127
    %v492 = vpop.permute.xlu0 %491
    %493 = vrot.lane.b32.xlu0 %v476, 127
    %v494 = vpop.permute.xlu0 %493
    %v495 = vsel %vm306, %v484, %v486
    %v496 = vsel %vm306, %v486, %v488
    %v497 = vsel %vm306, %v490, %v492
    %v498 = vsel %vm306, %v492, %v494
    %v503 = vadd.f32 %v409, %v495
    %v504 = vadd.f32 %v410, %v496
    %v505 = vadd.f32 %v411, %v497
    %v506 = vadd.f32 %v412, %v498
    %507 = vset.pattern.permute.xlu0 7
    %508 = vperm.xlu0 %507, %v106
    %v509 = vpop.permute.xlu0 %508
    %v511 = vlaneseq
    %v512 = vshrl.u32 %v511, 7
    %v513 = vsub.s32 3, %v512
    %v514 = vrot.slane %v216, %v513
    %v515 = vlaneseq
    %v516 = vshrl.u32 %v515, 7
    %v517 = vsub.s32 7, %v516
    %v518 = vrot.slane %v216, %v517
    %v519 = vlaneseq
    %v520 = vshrl.u32 %v519, 7
    %v521 = vsub.s32 3, %v520
    %v522 = vrot.slane %v217, %v521
    %v523 = vlaneseq
    %v524 = vshrl.u32 %v523, 7
    %v525 = vsub.s32 3, %v524
    %v526 = vrot.slane %v218, %v525
    %v527 = vlaneseq
    %v528 = vshrl.u32 %v527, 7
    %v529 = vsub.s32 7, %v528
    %v530 = vrot.slane %v218, %v529
    %v531 = vlaneseq
    %v532 = vshrl.u32 %v531, 7
    %v533 = vsub.s32 3, %v532
    %v534 = vrot.slane %v219, %v533
    %v541 = vlaneseq
    %v542 = vshrl.u32 %v541, 7
    %v543 = vsub.s32 3, %v542
    %v544 = vrot.slane %v514, %v543
    %v545 = vlaneseq
    %v546 = vshrl.u32 %v545, 7
    %v547 = vsub.s32 3, %v546
    %v548 = vrot.slane %v518, %v547
    %v549 = vlaneseq
    %v550 = vshrl.u32 %v549, 7
    %v551 = vsub.s32 3, %v550
    %v552 = vrot.slane %v522, %v551
    %v553 = vlaneseq
    %v554 = vshrl.u32 %v553, 7
    %v555 = vsub.s32 3, %v554
    %v556 = vrot.slane %v526, %v555
    %v557 = vlaneseq
    %v558 = vshrl.u32 %v557, 7
    %v559 = vsub.s32 3, %v558
    %v560 = vrot.slane %v530, %v559
    %v561 = vlaneseq
    %v562 = vshrl.u32 %v561, 7
    %v563 = vsub.s32 3, %v562
    %v564 = vrot.slane %v534, %v563
    %v565 = vmul.f32 %v509, %v544
    %v566 = vmul.f32 %v509, %v548
    %v567 = vmul.f32 %v509, %v552
    %v568 = vmul.f32 %v509, %v556
    %v569 = vmul.f32 %v509, %v560
    %v570 = vmul.f32 %v509, %v564
    %577 = vrot.lane.b32.xlu0 %v565, 127
    %v578 = vpop.permute.xlu0 %577
    %579 = vrot.lane.b32.xlu0 %v566, 127
    %v580 = vpop.permute.xlu0 %579
    %581 = vrot.lane.b32.xlu0 %v567, 127
    %v582 = vpop.permute.xlu0 %581
    %583 = vrot.lane.b32.xlu0 %v568, 127
    %v584 = vpop.permute.xlu0 %583
    %585 = vrot.lane.b32.xlu0 %v569, 127
    %v586 = vpop.permute.xlu0 %585
    %587 = vrot.lane.b32.xlu0 %v570, 127
    %v588 = vpop.permute.xlu0 %587
    %v589 = vsel %vm306, %v578, %v580
    %v590 = vsel %vm306, %v580, %v582
    %v591 = vsel %vm306, %v584, %v586
    %v592 = vsel %vm306, %v586, %v588
    %v597 = vadd.f32 %v503, %v589
    %v598 = vadd.f32 %v504, %v590
    %v599 = vadd.f32 %v505, %v591
    %v600 = vadd.f32 %v506, %v592
    %v601 = vsel %vm88, 1, 0
    %v602 = vsel %vm89, 1, 0
    %vm603 = vcmp.eq.s32.totalorder %v601, 1
    %vm604 = vcmp.eq.s32.totalorder %v602, 1
    %v605 = vcombine.high %v216, %v216
    %v606 = vcombine.high %v218, %v218
    %607 = vrot.lane.b32.xlu0 %v216, 126
    %v608 = vpop.permute.xlu0 %607
    %609 = vrot.lane.b32.xlu0 %v605, 126
    %v610 = vpop.permute.xlu0 %609
    %611 = vrot.lane.b32.xlu0 %v217, 126
    %v612 = vpop.permute.xlu0 %611
    %613 = vrot.lane.b32.xlu0 %v218, 126
    %v614 = vpop.permute.xlu0 %613
    %615 = vrot.lane.b32.xlu0 %v606, 126
    %v616 = vpop.permute.xlu0 %615
    %617 = vrot.lane.b32.xlu0 %v219, 126
    %v618 = vpop.permute.xlu0 %617
    %vm619 = vcmask 1031168
    %v620 = vsel %vm619, %v608, %v610
    %v621 = vsel %vm619, %v610, %v612
    %v622 = vsel %vm619, %v614, %v616
    %v623 = vsel %vm619, %v616, %v618
    %v628 = vsel %vm603, %v620, 0.0
    %v629 = vsel %vm604, %v621, 0.0
    %v630 = vsel %vm603, %v622, 0.0
    %v631 = vsel %vm604, %v623, 0.0
    %v632 = vld [vmem:[%s1] sm:$0xf]
    %634 = vset.pattern.permute.xlu0 8
    %635 = vperm.xlu0 %634, %v632
    %v636 = vpop.permute.xlu0 %635
    %v638 = vlaneseq
    %v639 = vshrl.u32 %v638, 7
    %v640 = vsub.s32 0, %v639
    %v641 = vrot.slane %v628, %v640
    %v642 = vlaneseq
    %v643 = vshrl.u32 %v642, 7
    %v644 = vsub.s32 0, %v643
    %v645 = vrot.slane %v629, %v644
    %v646 = vlaneseq
    %v647 = vshrl.u32 %v646, 7
    %v648 = vsub.s32 0, %v647
    %v649 = vrot.slane %v630, %v648
    %v650 = vlaneseq
    %v651 = vshrl.u32 %v650, 7
    %v652 = vsub.s32 0, %v651
    %v653 = vrot.slane %v631, %v652
    %v654 = vmul.f32 %v636, %v641
    %v655 = vmul.f32 %v636, %v645
    %v656 = vmul.f32 %v636, %v649
    %v657 = vmul.f32 %v636, %v653
    %v658 = vadd.f32 %v597, %v654
    %v659 = vadd.f32 %v598, %v655
    %v660 = vadd.f32 %v599, %v656
    %v661 = vadd.f32 %v600, %v657
    %662 = vset.pattern.permute.xlu0 9
    %663 = vperm.xlu0 %662, %v632
    %v664 = vpop.permute.xlu0 %663
    %v666 = vlaneseq
    %v667 = vshrl.u32 %v666, 7
    %v668 = vsub.s32 1, %v667
    %v669 = vrot.slane %v628, %v668
    %v670 = vlaneseq
    %v671 = vshrl.u32 %v670, 7
    %v672 = vsub.s32 1, %v671
    %v673 = vrot.slane %v629, %v672
    %v674 = vlaneseq
    %v675 = vshrl.u32 %v674, 7
    %v676 = vsub.s32 1, %v675
    %v677 = vrot.slane %v630, %v676
    %v678 = vlaneseq
    %v679 = vshrl.u32 %v678, 7
    %v680 = vsub.s32 1, %v679
    %v681 = vrot.slane %v631, %v680
    %v682 = vmul.f32 %v664, %v669
    %v683 = vmul.f32 %v664, %v673
    %v684 = vmul.f32 %v664, %v677
    %v685 = vmul.f32 %v664, %v681
    %v686 = vadd.f32 %v658, %v682
    %v687 = vadd.f32 %v659, %v683
    %v688 = vadd.f32 %v660, %v684
    %v689 = vadd.f32 %v661, %v685
    %690 = vset.pattern.permute.xlu0 10
    %691 = vperm.xlu0 %690, %v632
    %v692 = vpop.permute.xlu0 %691
    %v694 = vlaneseq
    %v695 = vshrl.u32 %v694, 7
    %v696 = vsub.s32 2, %v695
    %v697 = vrot.slane %v628, %v696
    %v698 = vlaneseq
    %v699 = vshrl.u32 %v698, 7
    %v700 = vsub.s32 2, %v699
    %v701 = vrot.slane %v629, %v700
    %v702 = vlaneseq
    %v703 = vshrl.u32 %v702, 7
    %v704 = vsub.s32 2, %v703
    %v705 = vrot.slane %v630, %v704
    %v706 = vlaneseq
    %v707 = vshrl.u32 %v706, 7
    %v708 = vsub.s32 2, %v707
    %v709 = vrot.slane %v631, %v708
    %v710 = vmul.f32 %v692, %v697
    %v711 = vmul.f32 %v692, %v701
    %v712 = vmul.f32 %v692, %v705
    %v713 = vmul.f32 %v692, %v709
    %v714 = vadd.f32 %v686, %v710
    %v715 = vadd.f32 %v687, %v711
    %v716 = vadd.f32 %v688, %v712
    %v717 = vadd.f32 %v689, %v713
    %718 = vset.pattern.permute.xlu0 11
    %719 = vperm.xlu0 %718, %v632
    %v720 = vpop.permute.xlu0 %719
    %v722 = vlaneseq
    %v723 = vshrl.u32 %v722, 7
    %v724 = vsub.s32 3, %v723
    %v725 = vrot.slane %v628, %v724
    %v726 = vlaneseq
    %v727 = vshrl.u32 %v726, 7
    %v728 = vsub.s32 3, %v727
    %v729 = vrot.slane %v629, %v728
    %v730 = vlaneseq
    %v731 = vshrl.u32 %v730, 7
    %v732 = vsub.s32 3, %v731
    %v733 = vrot.slane %v630, %v732
    %v734 = vlaneseq
    %v735 = vshrl.u32 %v734, 7
    %v736 = vsub.s32 3, %v735
    %v737 = vrot.slane %v631, %v736
    %v738 = vmul.f32 %v720, %v725
    %v739 = vmul.f32 %v720, %v729
    %v740 = vmul.f32 %v720, %v733
    %v741 = vmul.f32 %v720, %v737
    %v742 = vadd.f32 %v714, %v738
    %v743 = vadd.f32 %v715, %v739
    %v744 = vadd.f32 %v716, %v740
    %v745 = vadd.f32 %v717, %v741
    %v746 = vld [vmem:[#allocation2] sm:$0xff]
    %v747 = vld [vmem:[#allocation2 + $0x8] sm:$0xf]
    %v748 = vld [vmem:[#allocation2 + $0xc] sm:$0xff]
    %v749 = vld [vmem:[#allocation2 + $0x14] sm:$0xf]
    %v754 = vcombine.high %v746, %v746
    %v755 = vcombine.high %v748, %v748
    %756 = vrot.lane.b32.xlu0 %v746, 112
    %v757 = vpop.permute.xlu0 %756
    %758 = vrot.lane.b32.xlu0 %v754, 112
    %v759 = vpop.permute.xlu0 %758
    %760 = vrot.lane.b32.xlu0 %v747, 112
    %v761 = vpop.permute.xlu0 %760
    %762 = vrot.lane.b32.xlu0 %v748, 112
    %v763 = vpop.permute.xlu0 %762
    %764 = vrot.lane.b32.xlu0 %v755, 112
    %v765 = vpop.permute.xlu0 %764
    %766 = vrot.lane.b32.xlu0 %v749, 112
    %v767 = vpop.permute.xlu0 %766
    %vm768 = vcmask 916480
    %v769 = vsel %vm768, %v757, %v759
    %v770 = vsel %vm768, %v759, %v761
    %v771 = vsel %vm768, %v763, %v765
    %v772 = vsel %vm768, %v765, %v767
    %v777 = vsel %vm94, %v769, 0.0
    %v778 = vsel %vm95, %v770, 0.0
    %v779 = vsel %vm94, %v771, 0.0
    %v780 = vsel %vm95, %v772, 0.0
    %v781 = vld [vmem:[%s1] sm:$0xf]
    %783 = vset.pattern.permute.xlu0 12
    %784 = vperm.xlu0 %783, %v781
    %v785 = vpop.permute.xlu0 %784
    %v787 = vlaneseq
    %v788 = vshrl.u32 %v787, 7
    %v789 = vsub.s32 0, %v788
    %v790 = vrot.slane %v777, %v789
    %v791 = vlaneseq
    %v792 = vshrl.u32 %v791, 7
    %v793 = vsub.s32 0, %v792
    %v794 = vrot.slane %v778, %v793
    %v795 = vlaneseq
    %v796 = vshrl.u32 %v795, 7
    %v797 = vsub.s32 0, %v796
    %v798 = vrot.slane %v779, %v797
    %v799 = vlaneseq
    %v800 = vshrl.u32 %v799, 7
    %v801 = vsub.s32 0, %v800
    %v802 = vrot.slane %v780, %v801
    %v803 = vmul.f32 %v785, %v790
    %v804 = vmul.f32 %v785, %v794
    %v805 = vmul.f32 %v785, %v798
    %v806 = vmul.f32 %v785, %v802
    %v807 = vadd.f32 %v742, %v803
    %v808 = vadd.f32 %v743, %v804
    %v809 = vadd.f32 %v744, %v805
    %v810 = vadd.f32 %v745, %v806
    %811 = vset.pattern.permute.xlu0 13
    %812 = vperm.xlu0 %811, %v781
    %v813 = vpop.permute.xlu0 %812
    %v815 = vlaneseq
    %v816 = vshrl.u32 %v815, 7
    %v817 = vsub.s32 1, %v816
    %v818 = vrot.slane %v777, %v817
    %v819 = vlaneseq
    %v820 = vshrl.u32 %v819, 7
    %v821 = vsub.s32 1, %v820
    %v822 = vrot.slane %v778, %v821
    %v823 = vlaneseq
    %v824 = vshrl.u32 %v823, 7
    %v825 = vsub.s32 1, %v824
    %v826 = vrot.slane %v779, %v825
    %v827 = vlaneseq
    %v828 = vshrl.u32 %v827, 7
    %v829 = vsub.s32 1, %v828
    %v830 = vrot.slane %v780, %v829
    %v831 = vmul.f32 %v813, %v818
    %v832 = vmul.f32 %v813, %v822
    %v833 = vmul.f32 %v813, %v826
    %v834 = vmul.f32 %v813, %v830
    %v835 = vadd.f32 %v807, %v831
    %v836 = vadd.f32 %v808, %v832
    %v837 = vadd.f32 %v809, %v833
    %v838 = vadd.f32 %v810, %v834
    %839 = vset.pattern.permute.xlu0 14
    %840 = vperm.xlu0 %839, %v781
    %v841 = vpop.permute.xlu0 %840
    %v843 = vlaneseq
    %v844 = vshrl.u32 %v843, 7
    %v845 = vsub.s32 2, %v844
    %v846 = vrot.slane %v777, %v845
    %v847 = vlaneseq
    %v848 = vshrl.u32 %v847, 7
    %v849 = vsub.s32 2, %v848
    %v850 = vrot.slane %v778, %v849
    %v851 = vlaneseq
    %v852 = vshrl.u32 %v851, 7
    %v853 = vsub.s32 2, %v852
    %v854 = vrot.slane %v779, %v853
    %v855 = vlaneseq
    %v856 = vshrl.u32 %v855, 7
    %v857 = vsub.s32 2, %v856
    %v858 = vrot.slane %v780, %v857
    %v859 = vmul.f32 %v841, %v846
    %v860 = vmul.f32 %v841, %v850
    %v861 = vmul.f32 %v841, %v854
    %v862 = vmul.f32 %v841, %v858
    %v863 = vadd.f32 %v835, %v859
    %v864 = vadd.f32 %v836, %v860
    %v865 = vadd.f32 %v837, %v861
    %v866 = vadd.f32 %v838, %v862
    %867 = vset.pattern.permute.xlu0 15
    %868 = vperm.xlu0 %867, %v781
    %v869 = vpop.permute.xlu0 %868
    %v871 = vlaneseq
    %v872 = vshrl.u32 %v871, 7
    %v873 = vsub.s32 3, %v872
    %v874 = vrot.slane %v777, %v873
    %v875 = vlaneseq
    %v876 = vshrl.u32 %v875, 7
    %v877 = vsub.s32 3, %v876
    %v878 = vrot.slane %v778, %v877
    %v879 = vlaneseq
    %v880 = vshrl.u32 %v879, 7
    %v881 = vsub.s32 3, %v880
    %v882 = vrot.slane %v779, %v881
    %v883 = vlaneseq
    %v884 = vshrl.u32 %v883, 7
    %v885 = vsub.s32 3, %v884
    %v886 = vrot.slane %v780, %v885
    %v887 = vmul.f32 %v869, %v874
    %v888 = vmul.f32 %v869, %v878
    %v889 = vmul.f32 %v869, %v882
    %v890 = vmul.f32 %v869, %v886
    %v891 = vadd.f32 %v863, %v887
    %v892 = vadd.f32 %v864, %v888
    %v893 = vadd.f32 %v865, %v889
    %v894 = vadd.f32 %v866, %v890
    %v895 = vld [vmem:[#allocation2] sm:$0xff]
    %v896 = vld [vmem:[#allocation2 + $0x8] sm:$0xf]
    %v897 = vld [vmem:[#allocation2 + $0xc] sm:$0xff]
    %v898 = vld [vmem:[#allocation2 + $0x14] sm:$0xf]
    %899 = vset.pattern.permute.xlu0 16
    %900 = vperm.xlu0 %899, %v781
    %v901 = vpop.permute.xlu0 %900
    %v907 = vlaneseq
    %v908 = vshrl.u32 %v907, 7
    %v909 = vsub.s32 0, %v908
    %v910 = vrot.slane %v895, %v909
    %v911 = vlaneseq
    %v912 = vshrl.u32 %v911, 7
    %v913 = vsub.s32 4, %v912
    %v914 = vrot.slane %v895, %v913
    %v915 = vlaneseq
    %v916 = vshrl.u32 %v915, 7
    %v917 = vsub.s32 0, %v916
    %v918 = vrot.slane %v896, %v917
    %v919 = vlaneseq
    %v920 = vshrl.u32 %v919, 7
    %v921 = vsub.s32 0, %v920
    %v922 = vrot.slane %v897, %v921
    %v923 = vlaneseq
    %v924 = vshrl.u32 %v923, 7
    %v925 = vsub.s32 4, %v924
    %v926 = vrot.slane %v897, %v925
    %v927 = vlaneseq
    %v928 = vshrl.u32 %v927, 7
    %v929 = vsub.s32 0, %v928
    %v930 = vrot.slane %v898, %v929
    %v937 = vlaneseq
    %v938 = vshrl.u32 %v937, 7
    %v939 = vsub.s32 0, %v938
    %v940 = vrot.slane %v910, %v939
    %v941 = vlaneseq
    %v942 = vshrl.u32 %v941, 7
    %v943 = vsub.s32 0, %v942
    %v944 = vrot.slane %v914, %v943
    %v945 = vlaneseq
    %v946 = vshrl.u32 %v945, 7
    %v947 = vsub.s32 0, %v946
    %v948 = vrot.slane %v918, %v947
    %v949 = vlaneseq
    %v950 = vshrl.u32 %v949, 7
    %v951 = vsub.s32 0, %v950
    %v952 = vrot.slane %v922, %v951
    %v953 = vlaneseq
    %v954 = vshrl.u32 %v953, 7
    %v955 = vsub.s32 0, %v954
    %v956 = vrot.slane %v926, %v955
    %v957 = vlaneseq
    %v958 = vshrl.u32 %v957, 7
    %v959 = vsub.s32 0, %v958
    %v960 = vrot.slane %v930, %v959
    %v961 = vmul.f32 %v901, %v940
    %v962 = vmul.f32 %v901, %v944
    %v963 = vmul.f32 %v901, %v948
    %v964 = vmul.f32 %v901, %v952
    %v965 = vmul.f32 %v901, %v956
    %v966 = vmul.f32 %v901, %v960
    %973 = vrot.lane.b32.xlu0 %v961, 111
    %v974 = vpop.permute.xlu0 %973
    %975 = vrot.lane.b32.xlu0 %v962, 111
    %v976 = vpop.permute.xlu0 %975
    %977 = vrot.lane.b32.xlu0 %v963, 111
    %v978 = vpop.permute.xlu0 %977
    %979 = vrot.lane.b32.xlu0 %v964, 111
    %v980 = vpop.permute.xlu0 %979
    %981 = vrot.lane.b32.xlu0 %v965, 111
    %v982 = vpop.permute.xlu0 %981
    %983 = vrot.lane.b32.xlu0 %v966, 111
    %v984 = vpop.permute.xlu0 %983
    %vm985 = vcmask 908288
    %v986 = vsel %vm985, %v974, %v976
    %v987 = vsel %vm985, %v976, %v978
    %v988 = vsel %vm985, %v980, %v982
    %v989 = vsel %vm985, %v982, %v984
    %v994 = vadd.f32 %v891, %v986
    %v995 = vadd.f32 %v892, %v987
    %v996 = vadd.f32 %v893, %v988
    %v997 = vadd.f32 %v894, %v989
    %998 = vset.pattern.permute.xlu0 17
    %999 = vperm.xlu0 %998, %v781
    %v1000 = vpop.permute.xlu0 %999
    %v1002 = vlaneseq
    %v1003 = vshrl.u32 %v1002, 7
    %v1004 = vsub.s32 1, %v1003
    %v1005 = vrot.slane %v895, %v1004
    %v1006 = vlaneseq
    %v1007 = vshrl.u32 %v1006, 7
    %v1008 = vsub.s32 5, %v1007
    %v1009 = vrot.slane %v895, %v1008
    %v1010 = vlaneseq
    %v1011 = vshrl.u32 %v1010, 7
    %v1012 = vsub.s32 1, %v1011
    %v1013 = vrot.slane %v896, %v1012
    %v1014 = vlaneseq
    %v1015 = vshrl.u32 %v1014, 7
    %v1016 = vsub.s32 1, %v1015
    %v1017 = vrot.slane %v897, %v1016
    %v1018 = vlaneseq
    %v1019 = vshrl.u32 %v1018, 7
    %v1020 = vsub.s32 5, %v1019
    %v1021 = vrot.slane %v897, %v1020
    %v1022 = vlaneseq
    %v1023 = vshrl.u32 %v1022, 7
    %v1024 = vsub.s32 1, %v1023
    %v1025 = vrot.slane %v898, %v1024
    %v1032 = vlaneseq
    %v1033 = vshrl.u32 %v1032, 7
    %v1034 = vsub.s32 1, %v1033
    %v1035 = vrot.slane %v1005, %v1034
    %v1036 = vlaneseq
    %v1037 = vshrl.u32 %v1036, 7
    %v1038 = vsub.s32 1, %v1037
    %v1039 = vrot.slane %v1009, %v1038
    %v1040 = vlaneseq
    %v1041 = vshrl.u32 %v1040, 7
    %v1042 = vsub.s32 1, %v1041
    %v1043 = vrot.slane %v1013, %v1042
    %v1044 = vlaneseq
    %v1045 = vshrl.u32 %v1044, 7
    %v1046 = vsub.s32 1, %v1045
    %v1047 = vrot.slane %v1017, %v1046
    %v1048 = vlaneseq
    %v1049 = vshrl.u32 %v1048, 7
    %v1050 = vsub.s32 1, %v1049
    %v1051 = vrot.slane %v1021, %v1050
    %v1052 = vlaneseq
    %v1053 = vshrl.u32 %v1052, 7
    %v1054 = vsub.s32 1, %v1053
    %v1055 = vrot.slane %v1025, %v1054
    %v1056 = vmul.f32 %v1000, %v1035
    %v1057 = vmul.f32 %v1000, %v1039
    %v1058 = vmul.f32 %v1000, %v1043
    %v1059 = vmul.f32 %v1000, %v1047
    %v1060 = vmul.f32 %v1000, %v1051
    %v1061 = vmul.f32 %v1000, %v1055
    %1068 = vrot.lane.b32.xlu0 %v1056, 111
    %v1069 = vpop.permute.xlu0 %1068
    %1070 = vrot.lane.b32.xlu0 %v1057, 111
    %v1071 = vpop.permute.xlu0 %1070
    %1072 = vrot.lane.b32.xlu0 %v1058, 111
    %v1073 = vpop.permute.xlu0 %1072
    %1074 = vrot.lane.b32.xlu0 %v1059, 111
    %v1075 = vpop.permute.xlu0 %1074
    %1076 = vrot.lane.b32.xlu0 %v1060, 111
    %v1077 = vpop.permute.xlu0 %1076
    %1078 = vrot.lane.b32.xlu0 %v1061, 111
    %v1079 = vpop.permute.xlu0 %1078
    %v1080 = vsel %vm985, %v1069, %v1071
    %v1081 = vsel %vm985, %v1071, %v1073
    %v1082 = vsel %vm985, %v1075, %v1077
    %v1083 = vsel %vm985, %v1077, %v1079
    %v1088 = vadd.f32 %v994, %v1080
    %v1089 = vadd.f32 %v995, %v1081
    %v1090 = vadd.f32 %v996, %v1082
    %v1091 = vadd.f32 %v997, %v1083
    %1092 = vset.pattern.permute.xlu0 18
    %1093 = vperm.xlu0 %1092, %v781
    %v1094 = vpop.permute.xlu0 %1093
    %v1096 = vlaneseq
    %v1097 = vshrl.u32 %v1096, 7
    %v1098 = vsub.s32 2, %v1097
    %v1099 = vrot.slane %v895, %v1098
    %v1100 = vlaneseq
    %v1101 = vshrl.u32 %v1100, 7
    %v1102 = vsub.s32 6, %v1101
    %v1103 = vrot.slane %v895, %v1102
    %v1104 = vlaneseq
    %v1105 = vshrl.u32 %v1104, 7
    %v1106 = vsub.s32 2, %v1105
    %v1107 = vrot.slane %v896, %v1106
    %v1108 = vlaneseq
    %v1109 = vshrl.u32 %v1108, 7
    %v1110 = vsub.s32 2, %v1109
    %v1111 = vrot.slane %v897, %v1110
    %v1112 = vlaneseq
    %v1113 = vshrl.u32 %v1112, 7
    %v1114 = vsub.s32 6, %v1113
    %v1115 = vrot.slane %v897, %v1114
    %v1116 = vlaneseq
    %v1117 = vshrl.u32 %v1116, 7
    %v1118 = vsub.s32 2, %v1117
    %v1119 = vrot.slane %v898, %v1118
    %v1126 = vlaneseq
    %v1127 = vshrl.u32 %v1126, 7
    %v1128 = vsub.s32 2, %v1127
    %v1129 = vrot.slane %v1099, %v1128
    %v1130 = vlaneseq
    %v1131 = vshrl.u32 %v1130, 7
    %v1132 = vsub.s32 2, %v1131
    %v1133 = vrot.slane %v1103, %v1132
    %v1134 = vlaneseq
    %v1135 = vshrl.u32 %v1134, 7
    %v1136 = vsub.s32 2, %v1135
    %v1137 = vrot.slane %v1107, %v1136
    %v1138 = vlaneseq
    %v1139 = vshrl.u32 %v1138, 7
    %v1140 = vsub.s32 2, %v1139
    %v1141 = vrot.slane %v1111, %v1140
    %v1142 = vlaneseq
    %v1143 = vshrl.u32 %v1142, 7
    %v1144 = vsub.s32 2, %v1143
    %v1145 = vrot.slane %v1115, %v1144
    %v1146 = vlaneseq
    %v1147 = vshrl.u32 %v1146, 7
    %v1148 = vsub.s32 2, %v1147
    %v1149 = vrot.slane %v1119, %v1148
    %v1150 = vmul.f32 %v1094, %v1129
    %v1151 = vmul.f32 %v1094, %v1133
    %v1152 = vmul.f32 %v1094, %v1137
    %v1153 = vmul.f32 %v1094, %v1141
    %v1154 = vmul.f32 %v1094, %v1145
    %v1155 = vmul.f32 %v1094, %v1149
    %1162 = vrot.lane.b32.xlu0 %v1150, 111
    %v1163 = vpop.permute.xlu0 %1162
    %1164 = vrot.lane.b32.xlu0 %v1151, 111
    %v1165 = vpop.permute.xlu0 %1164
    %1166 = vrot.lane.b32.xlu0 %v1152, 111
    %v1167 = vpop.permute.xlu0 %1166
    %1168 = vrot.lane.b32.xlu0 %v1153, 111
    %v1169 = vpop.permute.xlu0 %1168
    %1170 = vrot.lane.b32.xlu0 %v1154, 111
    %v1171 = vpop.permute.xlu0 %1170
    %1172 = vrot.lane.b32.xlu0 %v1155, 111
    %v1173 = vpop.permute.xlu0 %1172
    %v1174 = vsel %vm985, %v1163, %v1165
    %v1175 = vsel %vm985, %v1165, %v1167
    %v1176 = vsel %vm985, %v1169, %v1171
    %v1177 = vsel %vm985, %v1171, %v1173
    %v1182 = vadd.f32 %v1088, %v1174
    %v1183 = vadd.f32 %v1089, %v1175
    %v1184 = vadd.f32 %v1090, %v1176
    %v1185 = vadd.f32 %v1091, %v1177
    %1186 = vset.pattern.permute.xlu0 19
    %1187 = vperm.xlu0 %1186, %v781
    %v1188 = vpop.permute.xlu0 %1187
    %v1190 = vlaneseq
    %v1191 = vshrl.u32 %v1190, 7
    %v1192 = vsub.s32 3, %v1191
    %v1193 = vrot.slane %v895, %v1192
    %v1194 = vlaneseq
    %v1195 = vshrl.u32 %v1194, 7
    %v1196 = vsub.s32 7, %v1195
    %v1197 = vrot.slane %v895, %v1196
    %v1198 = vlaneseq
    %v1199 = vshrl.u32 %v1198, 7
    %v1200 = vsub.s32 3, %v1199
    %v1201 = vrot.slane %v896, %v1200
    %v1202 = vlaneseq
    %v1203 = vshrl.u32 %v1202, 7
    %v1204 = vsub.s32 3, %v1203
    %v1205 = vrot.slane %v897, %v1204
    %v1206 = vlaneseq
    %v1207 = vshrl.u32 %v1206, 7
    %v1208 = vsub.s32 7, %v1207
    %v1209 = vrot.slane %v897, %v1208
    %v1210 = vlaneseq
    %v1211 = vshrl.u32 %v1210, 7
    %v1212 = vsub.s32 3, %v1211
    %v1213 = vrot.slane %v898, %v1212
    %v1220 = vlaneseq
    %v1221 = vshrl.u32 %v1220, 7
    %v1222 = vsub.s32 3, %v1221
    %v1223 = vrot.slane %v1193, %v1222
    %v1224 = vlaneseq
    %v1225 = vshrl.u32 %v1224, 7
    %v1226 = vsub.s32 3, %v1225
    %v1227 = vrot.slane %v1197, %v1226
    %v1228 = vlaneseq
    %v1229 = vshrl.u32 %v1228, 7
    %v1230 = vsub.s32 3, %v1229
    %v1231 = vrot.slane %v1201, %v1230
    %v1232 = vlaneseq
    %v1233 = vshrl.u32 %v1232, 7
    %v1234 = vsub.s32 3, %v1233
    %v1235 = vrot.slane %v1205, %v1234
    %v1236 = vlaneseq
    %v1237 = vshrl.u32 %v1236, 7
    %v1238 = vsub.s32 3, %v1237
    %v1239 = vrot.slane %v1209, %v1238
    %v1240 = vlaneseq
    %v1241 = vshrl.u32 %v1240, 7
    %v1242 = vsub.s32 3, %v1241
    %v1243 = vrot.slane %v1213, %v1242
    %v1244 = vmul.f32 %v1188, %v1223
    %v1245 = vmul.f32 %v1188, %v1227
    %v1246 = vmul.f32 %v1188, %v1231
    %v1247 = vmul.f32 %v1188, %v1235
    %v1248 = vmul.f32 %v1188, %v1239
    %v1249 = vmul.f32 %v1188, %v1243
    %1256 = vrot.lane.b32.xlu0 %v1244, 111
    %v1257 = vpop.permute.xlu0 %1256
    %1258 = vrot.lane.b32.xlu0 %v1245, 111
    %v1259 = vpop.permute.xlu0 %1258
    %1260 = vrot.lane.b32.xlu0 %v1246, 111
    %v1261 = vpop.permute.xlu0 %1260
    %1262 = vrot.lane.b32.xlu0 %v1247, 111
    %v1263 = vpop.permute.xlu0 %1262
    %1264 = vrot.lane.b32.xlu0 %v1248, 111
    %v1265 = vpop.permute.xlu0 %1264
    %1266 = vrot.lane.b32.xlu0 %v1249, 111
    %v1267 = vpop.permute.xlu0 %1266
    %v1268 = vsel %vm985, %v1257, %v1259
    %v1269 = vsel %vm985, %v1259, %v1261
    %v1270 = vsel %vm985, %v1263, %v1265
    %v1271 = vsel %vm985, %v1265, %v1267
    %v1276 = vadd.f32 %v1182, %v1268
    %v1277 = vadd.f32 %v1183, %v1269
    %v1278 = vadd.f32 %v1184, %v1270
    %v1279 = vadd.f32 %v1185, %v1271
    %v1280 = vcombine.high %v895, %v895
    %v1281 = vcombine.high %v897, %v897
    %1282 = vrot.lane.b32.xlu0 %v895, 110
    %v1283 = vpop.permute.xlu0 %1282
    %1284 = vrot.lane.b32.xlu0 %v1280, 110
    %v1285 = vpop.permute.xlu0 %1284
    %1286 = vrot.lane.b32.xlu0 %v896, 110
    %v1287 = vpop.permute.xlu0 %1286
    %1288 = vrot.lane.b32.xlu0 %v897, 110
    %v1289 = vpop.permute.xlu0 %1288
    %1290 = vrot.lane.b32.xlu0 %v1281, 110
    %v1291 = vpop.permute.xlu0 %1290
    %1292 = vrot.lane.b32.xlu0 %v898, 110
    %v1293 = vpop.permute.xlu0 %1292
    %vm1294 = vcmask 900096
    %v1295 = vsel %vm1294, %v1283, %v1285
    %v1296 = vsel %vm1294, %v1285, %v1287
    %v1297 = vsel %vm1294, %v1289, %v1291
    %v1298 = vsel %vm1294, %v1291, %v1293
    %v1303 = vsel %vm603, %v1295, 0.0
    %v1304 = vsel %vm604, %v1296, 0.0
    %v1305 = vsel %vm603, %v1297, 0.0
    %v1306 = vsel %vm604, %v1298, 0.0
    %v1307 = vld [vmem:[%s1] sm:$0xf]
    %1309 = vset.pattern.permute.xlu0 20
    %1310 = vperm.xlu0 %1309, %v1307
    %v1311 = vpop.permute.xlu0 %1310
    %v1313 = vlaneseq
    %v1314 = vshrl.u32 %v1313, 7
    %v1315 = vsub.s32 0, %v1314
    %v1316 = vrot.slane %v1303, %v1315
    %v1317 = vlaneseq
    %v1318 = vshrl.u32 %v1317, 7
    %v1319 = vsub.s32 0, %v1318
    %v1320 = vrot.slane %v1304, %v1319
    %v1321 = vlaneseq
    %v1322 = vshrl.u32 %v1321, 7
    %v1323 = vsub.s32 0, %v1322
    %v1324 = vrot.slane %v1305, %v1323
    %v1325 = vlaneseq
    %v1326 = vshrl.u32 %v1325, 7
    %v1327 = vsub.s32 0, %v1326
    %v1328 = vrot.slane %v1306, %v1327
    %v1329 = vmul.f32 %v1311, %v1316
    %v1330 = vmul.f32 %v1311, %v1320
    %v1331 = vmul.f32 %v1311, %v1324
    %v1332 = vmul.f32 %v1311, %v1328
    %v1333 = vadd.f32 %v1276, %v1329
    %v1334 = vadd.f32 %v1277, %v1330
    %v1335 = vadd.f32 %v1278, %v1331
    %v1336 = vadd.f32 %v1279, %v1332
    %1337 = vset.pattern.permute.xlu0 21
    %1338 = vperm.xlu0 %1337, %v1307
    %v1339 = vpop.permute.xlu0 %1338
    %v1341 = vlaneseq
    %v1342 = vshrl.u32 %v1341, 7
    %v1343 = vsub.s32 1, %v1342
    %v1344 = vrot.slane %v1303, %v1343
    %v1345 = vlaneseq
    %v1346 = vshrl.u32 %v1345, 7
    %v1347 = vsub.s32 1, %v1346
    %v1348 = vrot.slane %v1304, %v1347
    %v1349 = vlaneseq
    %v1350 = vshrl.u32 %v1349, 7
    %v1351 = vsub.s32 1, %v1350
    %v1352 = vrot.slane %v1305, %v1351
    %v1353 = vlaneseq
    %v1354 = vshrl.u32 %v1353, 7
    %v1355 = vsub.s32 1, %v1354
    %v1356 = vrot.slane %v1306, %v1355
    %v1357 = vmul.f32 %v1339, %v1344
    %v1358 = vmul.f32 %v1339, %v1348
    %v1359 = vmul.f32 %v1339, %v1352
    %v1360 = vmul.f32 %v1339, %v1356
    %v1361 = vadd.f32 %v1333, %v1357
    %v1362 = vadd.f32 %v1334, %v1358
    %v1363 = vadd.f32 %v1335, %v1359
    %v1364 = vadd.f32 %v1336, %v1360
    %1365 = vset.pattern.permute.xlu0 22
    %1366 = vperm.xlu0 %1365, %v1307
    %v1367 = vpop.permute.xlu0 %1366
    %v1369 = vlaneseq
    %v1370 = vshrl.u32 %v1369, 7
    %v1371 = vsub.s32 2, %v1370
    %v1372 = vrot.slane %v1303, %v1371
    %v1373 = vlaneseq
    %v1374 = vshrl.u32 %v1373, 7
    %v1375 = vsub.s32 2, %v1374
    %v1376 = vrot.slane %v1304, %v1375
    %v1377 = vlaneseq
    %v1378 = vshrl.u32 %v1377, 7
    %v1379 = vsub.s32 2, %v1378
    %v1380 = vrot.slane %v1305, %v1379
    %v1381 = vlaneseq
    %v1382 = vshrl.u32 %v1381, 7
    %v1383 = vsub.s32 2, %v1382
    %v1384 = vrot.slane %v1306, %v1383
    %v1385 = vmul.f32 %v1367, %v1372
    %v1386 = vmul.f32 %v1367, %v1376
    %v1387 = vmul.f32 %v1367, %v1380
    %v1388 = vmul.f32 %v1367, %v1384
    %v1389 = vadd.f32 %v1361, %v1385
    %v1390 = vadd.f32 %v1362, %v1386
    %v1391 = vadd.f32 %v1363, %v1387
    %v1392 = vadd.f32 %v1364, %v1388
    %1393 = vset.pattern.permute.xlu0 23
    %1394 = vperm.xlu0 %1393, %v1307
    %v1395 = vpop.permute.xlu0 %1394
    %v1397 = vlaneseq
    %v1398 = vshrl.u32 %v1397, 7
    %v1399 = vsub.s32 3, %v1398
    %v1400 = vrot.slane %v1303, %v1399
    %v1401 = vlaneseq
    %v1402 = vshrl.u32 %v1401, 7
    %v1403 = vsub.s32 3, %v1402
    %v1404 = vrot.slane %v1304, %v1403
    %v1405 = vlaneseq
    %v1406 = vshrl.u32 %v1405, 7
    %v1407 = vsub.s32 3, %v1406
    %v1408 = vrot.slane %v1305, %v1407
    %v1409 = vlaneseq
    %v1410 = vshrl.u32 %v1409, 7
    %v1411 = vsub.s32 3, %v1410
    %v1412 = vrot.slane %v1306, %v1411
    %v1413 = vmul.f32 %v1395, %v1400
    %v1414 = vmul.f32 %v1395, %v1404
    %v1415 = vmul.f32 %v1395, %v1408
    %v1416 = vmul.f32 %v1395, %v1412
    %v1417 = vadd.f32 %v1389, %v1413
    %v1418 = vadd.f32 %v1390, %v1414
    %v1419 = vadd.f32 %v1391, %v1415
    %v1420 = vadd.f32 %v1392, %v1416
    %v1421 = vld [vmem:[#allocation2] sm:$0xff]
    %v1422 = vld [vmem:[#allocation2 + $0x8] sm:$0xf]
    %v1423 = vld [vmem:[#allocation2 + $0xc] sm:$0xff]
    %v1424 = vld [vmem:[#allocation2 + $0x14] sm:$0xf]
    %v1429 = vcombine.high %v1421, %v1421
    %v1430 = vcombine.high %v1423, %v1423
    %1431 = vrot.lane.b32.xlu0 %v1421, 96
    %v1432 = vpop.permute.xlu0 %1431
    %1433 = vrot.lane.b32.xlu0 %v1429, 96
    %v1434 = vpop.permute.xlu0 %1433
    %1435 = vrot.lane.b32.xlu0 %v1422, 96
    %v1436 = vpop.permute.xlu0 %1435
    %1437 = vrot.lane.b32.xlu0 %v1423, 96
    %v1438 = vpop.permute.xlu0 %1437
    %1439 = vrot.lane.b32.xlu0 %v1430, 96
    %v1440 = vpop.permute.xlu0 %1439
    %1441 = vrot.lane.b32.xlu0 %v1424, 96
    %v1442 = vpop.permute.xlu0 %1441
    %vm1443 = vcmask 785408
    %v1444 = vsel %vm1443, %v1432, %v1434
    %v1445 = vsel %vm1443, %v1434, %v1436
    %v1446 = vsel %vm1443, %v1438, %v1440
    %v1447 = vsel %vm1443, %v1440, %v1442
    %v1452 = vsel %vm94, %v1444, 0.0
    %v1453 = vsel %vm95, %v1445, 0.0
    %v1454 = vsel %vm94, %v1446, 0.0
    %v1455 = vsel %vm95, %v1447, 0.0
    %v1456 = vld [vmem:[%s1] sm:$0xf]
    %1458 = vset.pattern.permute.xlu0 24
    %1459 = vperm.xlu0 %1458, %v1456
    %v1460 = vpop.permute.xlu0 %1459
    %v1462 = vlaneseq
    %v1463 = vshrl.u32 %v1462, 7
    %v1464 = vsub.s32 0, %v1463
    %v1465 = vrot.slane %v1452, %v1464
    %v1466 = vlaneseq
    %v1467 = vshrl.u32 %v1466, 7
    %v1468 = vsub.s32 0, %v1467
    %v1469 = vrot.slane %v1453, %v1468
    %v1470 = vlaneseq
    %v1471 = vshrl.u32 %v1470, 7
    %v1472 = vsub.s32 0, %v1471
    %v1473 = vrot.slane %v1454, %v1472
    %v1474 = vlaneseq
    %v1475 = vshrl.u32 %v1474, 7
    %v1476 = vsub.s32 0, %v1475
    %v1477 = vrot.slane %v1455, %v1476
    %v1478 = vmul.f32 %v1460, %v1465
    %v1479 = vmul.f32 %v1460, %v1469
    %v1480 = vmul.f32 %v1460, %v1473
    %v1481 = vmul.f32 %v1460, %v1477
    %v1482 = vadd.f32 %v1417, %v1478
    %v1483 = vadd.f32 %v1418, %v1479
    %v1484 = vadd.f32 %v1419, %v1480
    %v1485 = vadd.f32 %v1420, %v1481
    %1486 = vset.pattern.permute.xlu0 25
    %1487 = vperm.xlu0 %1486, %v1456
    %v1488 = vpop.permute.xlu0 %1487
    %v1490 = vlaneseq
    %v1491 = vshrl.u32 %v1490, 7
    %v1492 = vsub.s32 1, %v1491
    %v1493 = vrot.slane %v1452, %v1492
    %v1494 = vlaneseq
    %v1495 = vshrl.u32 %v1494, 7
    %v1496 = vsub.s32 1, %v1495
    %v1497 = vrot.slane %v1453, %v1496
    %v1498 = vlaneseq
    %v1499 = vshrl.u32 %v1498, 7
    %v1500 = vsub.s32 1, %v1499
    %v1501 = vrot.slane %v1454, %v1500
    %v1502 = vlaneseq
    %v1503 = vshrl.u32 %v1502, 7
    %v1504 = vsub.s32 1, %v1503
    %v1505 = vrot.slane %v1455, %v1504
    %v1506 = vmul.f32 %v1488, %v1493
    %v1507 = vmul.f32 %v1488, %v1497
    %v1508 = vmul.f32 %v1488, %v1501
    %v1509 = vmul.f32 %v1488, %v1505
    %v1510 = vadd.f32 %v1482, %v1506
    %v1511 = vadd.f32 %v1483, %v1507
    %v1512 = vadd.f32 %v1484, %v1508
    %v1513 = vadd.f32 %v1485, %v1509
    %1514 = vset.pattern.permute.xlu0 26
    %1515 = vperm.xlu0 %1514, %v1456
    %v1516 = vpop.permute.xlu0 %1515
    %v1518 = vlaneseq
    %v1519 = vshrl.u32 %v1518, 7
    %v1520 = vsub.s32 2, %v1519
    %v1521 = vrot.slane %v1452, %v1520
    %v1522 = vlaneseq
    %v1523 = vshrl.u32 %v1522, 7
    %v1524 = vsub.s32 2, %v1523
    %v1525 = vrot.slane %v1453, %v1524
    %v1526 = vlaneseq
    %v1527 = vshrl.u32 %v1526, 7
    %v1528 = vsub.s32 2, %v1527
    %v1529 = vrot.slane %v1454, %v1528
    %v1530 = vlaneseq
    %v1531 = vshrl.u32 %v1530, 7
    %v1532 = vsub.s32 2, %v1531
    %v1533 = vrot.slane %v1455, %v1532
    %v1534 = vmul.f32 %v1516, %v1521
    %v1535 = vmul.f32 %v1516, %v1525
    %v1536 = vmul.f32 %v1516, %v1529
    %v1537 = vmul.f32 %v1516, %v1533
    %v1538 = vadd.f32 %v1510, %v1534
    %v1539 = vadd.f32 %v1511, %v1535
    %v1540 = vadd.f32 %v1512, %v1536
    %v1541 = vadd.f32 %v1513, %v1537
    %1542 = vset.pattern.permute.xlu0 27
    %1543 = vperm.xlu0 %1542, %v1456
    %v1544 = vpop.permute.xlu0 %1543
    %v1546 = vlaneseq
    %v1547 = vshrl.u32 %v1546, 7
    %v1548 = vsub.s32 3, %v1547
    %v1549 = vrot.slane %v1452, %v1548
    %v1550 = vlaneseq
    %v1551 = vshrl.u32 %v1550, 7
    %v1552 = vsub.s32 3, %v1551
    %v1553 = vrot.slane %v1453, %v1552
    %v1554 = vlaneseq
    %v1555 = vshrl.u32 %v1554, 7
    %v1556 = vsub.s32 3, %v1555
    %v1557 = vrot.slane %v1454, %v1556
    %v1558 = vlaneseq
    %v1559 = vshrl.u32 %v1558, 7
    %v1560 = vsub.s32 3, %v1559
    %v1561 = vrot.slane %v1455, %v1560
    %v1562 = vmul.f32 %v1544, %v1549
    %v1563 = vmul.f32 %v1544, %v1553
    %v1564 = vmul.f32 %v1544, %v1557
    %v1565 = vmul.f32 %v1544, %v1561
    %v1566 = vadd.f32 %v1538, %v1562
    %v1567 = vadd.f32 %v1539, %v1563
    %v1568 = vadd.f32 %v1540, %v1564
    %v1569 = vadd.f32 %v1541, %v1565
    %v1570 = vld [vmem:[#allocation2] sm:$0xff]
    %v1571 = vld [vmem:[#allocation2 + $0x8] sm:$0xf]
    %v1572 = vld [vmem:[#allocation2 + $0xc] sm:$0xff]
    %v1573 = vld [vmem:[#allocation2 + $0x14] sm:$0xf]
    %1574 = vset.pattern.permute.xlu0 28
    %1575 = vperm.xlu0 %1574, %v1456
    %v1576 = vpop.permute.xlu0 %1575
    %v1582 = vlaneseq
    %v1583 = vshrl.u32 %v1582, 7
    %v1584 = vsub.s32 0, %v1583
    %v1585 = vrot.slane %v1570, %v1584
    %v1586 = vlaneseq
    %v1587 = vshrl.u32 %v1586, 7
    %v1588 = vsub.s32 4, %v1587
    %v1589 = vrot.slane %v1570, %v1588
    %v1590 = vlaneseq
    %v1591 = vshrl.u32 %v1590, 7
    %v1592 = vsub.s32 0, %v1591
    %v1593 = vrot.slane %v1571, %v1592
    %v1594 = vlaneseq
    %v1595 = vshrl.u32 %v1594, 7
    %v1596 = vsub.s32 0, %v1595
    %v1597 = vrot.slane %v1572, %v1596
    %v1598 = vlaneseq
    %v1599 = vshrl.u32 %v1598, 7
    %v1600 = vsub.s32 4, %v1599
    %v1601 = vrot.slane %v1572, %v1600
    %v1602 = vlaneseq
    %v1603 = vshrl.u32 %v1602, 7
    %v1604 = vsub.s32 0, %v1603
    %v1605 = vrot.slane %v1573, %v1604
    %v1612 = vlaneseq
    %v1613 = vshrl.u32 %v1612, 7
    %v1614 = vsub.s32 0, %v1613
    %v1615 = vrot.slane %v1585, %v1614
    %v1616 = vlaneseq
    %v1617 = vshrl.u32 %v1616, 7
    %v1618 = vsub.s32 0, %v1617
    %v1619 = vrot.slane %v1589, %v1618
    %v1620 = vlaneseq
    %v1621 = vshrl.u32 %v1620, 7
    %v1622 = vsub.s32 0, %v1621
    %v1623 = vrot.slane %v1593, %v1622
    %v1624 = vlaneseq
    %v1625 = vshrl.u32 %v1624, 7
    %v1626 = vsub.s32 0, %v1625
    %v1627 = vrot.slane %v1597, %v1626
    %v1628 = vlaneseq
    %v1629 = vshrl.u32 %v1628, 7
    %v1630 = vsub.s32 0, %v1629
    %v1631 = vrot.slane %v1601, %v1630
    %v1632 = vlaneseq
    %v1633 = vshrl.u32 %v1632, 7
    %v1634 = vsub.s32 0, %v1633
    %v1635 = vrot.slane %v1605, %v1634
    %v1636 = vmul.f32 %v1576, %v1615
    %v1637 = vmul.f32 %v1576, %v1619
    %v1638 = vmul.f32 %v1576, %v1623
    %v1639 = vmul.f32 %v1576, %v1627
    %v1640 = vmul.f32 %v1576, %v1631
    %v1641 = vmul.f32 %v1576, %v1635
    %1648 = vrot.lane.b32.xlu0 %v1636, 95
    %v1649 = vpop.permute.xlu0 %1648
    %1650 = vrot.lane.b32.xlu0 %v1637, 95
    %v1651 = vpop.permute.xlu0 %1650
    %1652 = vrot.lane.b32.xlu0 %v1638, 95
    %v1653 = vpop.permute.xlu0 %1652
    %1654 = vrot.lane.b32.xlu0 %v1639, 95
    %v1655 = vpop.permute.xlu0 %1654
    %1656 = vrot.lane.b32.xlu0 %v1640, 95
    %v1657 = vpop.permute.xlu0 %1656
    %1658 = vrot.lane.b32.xlu0 %v1641, 95
    %v1659 = vpop.permute.xlu0 %1658
    %vm1660 = vcmask 777216
    %v1661 = vsel %vm1660, %v1649, %v1651
    %v1662 = vsel %vm1660, %v1651, %v1653
    %v1663 = vsel %vm1660, %v1655, %v1657
    %v1664 = vsel %vm1660, %v1657, %v1659
    %v1669 = vadd.f32 %v1566, %v1661
    %v1670 = vadd.f32 %v1567, %v1662
    %v1671 = vadd.f32 %v1568, %v1663
    %v1672 = vadd.f32 %v1569, %v1664
    %1673 = vset.pattern.permute.xlu0 29
    %1674 = vperm.xlu0 %1673, %v1456
    %v1675 = vpop.permute.xlu0 %1674
    %v1677 = vlaneseq
    %v1678 = vshrl.u32 %v1677, 7
    %v1679 = vsub.s32 1, %v1678
    %v1680 = vrot.slane %v1570, %v1679
    %v1681 = vlaneseq
    %v1682 = vshrl.u32 %v1681, 7
    %v1683 = vsub.s32 5, %v1682
    %v1684 = vrot.slane %v1570, %v1683
    %v1685 = vlaneseq
    %v1686 = vshrl.u32 %v1685, 7
    %v1687 = vsub.s32 1, %v1686
    %v1688 = vrot.slane %v1571, %v1687
    %v1689 = vlaneseq
    %v1690 = vshrl.u32 %v1689, 7
    %v1691 = vsub.s32 1, %v1690
    %v1692 = vrot.slane %v1572, %v1691
    %v1693 = vlaneseq
    %v1694 = vshrl.u32 %v1693, 7
    %v1695 = vsub.s32 5, %v1694
    %v1696 = vrot.slane %v1572, %v1695
    %v1697 = vlaneseq
    %v1698 = vshrl.u32 %v1697, 7
    %v1699 = vsub.s32 1, %v1698
    %v1700 = vrot.slane %v1573, %v1699
    %v1707 = vlaneseq
    %v1708 = vshrl.u32 %v1707, 7
    %v1709 = vsub.s32 1, %v1708
    %v1710 = vrot.slane %v1680, %v1709
    %v1711 = vlaneseq
    %v1712 = vshrl.u32 %v1711, 7
    %v1713 = vsub.s32 1, %v1712
    %v1714 = vrot.slane %v1684, %v1713
    %v1715 = vlaneseq
    %v1716 = vshrl.u32 %v1715, 7
    %v1717 = vsub.s32 1, %v1716
    %v1718 = vrot.slane %v1688, %v1717
    %v1719 = vlaneseq
    %v1720 = vshrl.u32 %v1719, 7
    %v1721 = vsub.s32 1, %v1720
    %v1722 = vrot.slane %v1692, %v1721
    %v1723 = vlaneseq
    %v1724 = vshrl.u32 %v1723, 7
    %v1725 = vsub.s32 1, %v1724
    %v1726 = vrot.slane %v1696, %v1725
    %v1727 = vlaneseq
    %v1728 = vshrl.u32 %v1727, 7
    %v1729 = vsub.s32 1, %v1728
    %v1730 = vrot.slane %v1700, %v1729
    %v1731 = vmul.f32 %v1675, %v1710
    %v1732 = vmul.f32 %v1675, %v1714
    %v1733 = vmul.f32 %v1675, %v1718
    %v1734 = vmul.f32 %v1675, %v1722
    %v1735 = vmul.f32 %v1675, %v1726
    %v1736 = vmul.f32 %v1675, %v1730
    %1743 = vrot.lane.b32.xlu0 %v1731, 95
    %v1744 = vpop.permute.xlu0 %1743
    %1745 = vrot.lane.b32.xlu0 %v1732, 95
    %v1746 = vpop.permute.xlu0 %1745
    %1747 = vrot.lane.b32.xlu0 %v1733, 95
    %v1748 = vpop.permute.xlu0 %1747
    %1749 = vrot.lane.b32.xlu0 %v1734, 95
    %v1750 = vpop.permute.xlu0 %1749
    %1751 = vrot.lane.b32.xlu0 %v1735, 95
    %v1752 = vpop.permute.xlu0 %1751
    %1753 = vrot.lane.b32.xlu0 %v1736, 95
    %v1754 = vpop.permute.xlu0 %1753
    %v1755 = vsel %vm1660, %v1744, %v1746
    %v1756 = vsel %vm1660, %v1746, %v1748
    %v1757 = vsel %vm1660, %v1750, %v1752
    %v1758 = vsel %vm1660, %v1752, %v1754
    %v1763 = vadd.f32 %v1669, %v1755
    %v1764 = vadd.f32 %v1670, %v1756
    %v1765 = vadd.f32 %v1671, %v1757
    %v1766 = vadd.f32 %v1672, %v1758
    %1767 = vset.pattern.permute.xlu0 30
    %1768 = vperm.xlu0 %1767, %v1456
    %v1769 = vpop.permute.xlu0 %1768
    %v1771 = vlaneseq
    %v1772 = vshrl.u32 %v1771, 7
    %v1773 = vsub.s32 2, %v1772
    %v1774 = vrot.slane %v1570, %v1773
    %v1775 = vlaneseq
    %v1776 = vshrl.u32 %v1775, 7
    %v1777 = vsub.s32 6, %v1776
    %v1778 = vrot.slane %v1570, %v1777
    %v1779 = vlaneseq
    %v1780 = vshrl.u32 %v1779, 7
    %v1781 = vsub.s32 2, %v1780
    %v1782 = vrot.slane %v1571, %v1781
    %v1783 = vlaneseq
    %v1784 = vshrl.u32 %v1783, 7
    %v1785 = vsub.s32 2, %v1784
    %v1786 = vrot.slane %v1572, %v1785
    %v1787 = vlaneseq
    %v1788 = vshrl.u32 %v1787, 7
    %v1789 = vsub.s32 6, %v1788
    %v1790 = vrot.slane %v1572, %v1789
    %v1791 = vlaneseq
    %v1792 = vshrl.u32 %v1791, 7
    %v1793 = vsub.s32 2, %v1792
    %v1794 = vrot.slane %v1573, %v1793
    %v1801 = vlaneseq
    %v1802 = vshrl.u32 %v1801, 7
    %v1803 = vsub.s32 2, %v1802
    %v1804 = vrot.slane %v1774, %v1803
    %v1805 = vlaneseq
    %v1806 = vshrl.u32 %v1805, 7
    %v1807 = vsub.s32 2, %v1806
    %v1808 = vrot.slane %v1778, %v1807
    %v1809 = vlaneseq
    %v1810 = vshrl.u32 %v1809, 7
    %v1811 = vsub.s32 2, %v1810
    %v1812 = vrot.slane %v1782, %v1811
    %v1813 = vlaneseq
    %v1814 = vshrl.u32 %v1813, 7
    %v1815 = vsub.s32 2, %v1814
    %v1816 = vrot.slane %v1786, %v1815
    %v1817 = vlaneseq
    %v1818 = vshrl.u32 %v1817, 7
    %v1819 = vsub.s32 2, %v1818
    %v1820 = vrot.slane %v1790, %v1819
    %v1821 = vlaneseq
    %v1822 = vshrl.u32 %v1821, 7
    %v1823 = vsub.s32 2, %v1822
    %v1824 = vrot.slane %v1794, %v1823
    %v1825 = vmul.f32 %v1769, %v1804
    %v1826 = vmul.f32 %v1769, %v1808
    %v1827 = vmul.f32 %v1769, %v1812
    %v1828 = vmul.f32 %v1769, %v1816
    %v1829 = vmul.f32 %v1769, %v1820
    %v1830 = vmul.f32 %v1769, %v1824
    %1837 = vrot.lane.b32.xlu0 %v1825, 95
    %v1838 = vpop.permute.xlu0 %1837
    %1839 = vrot.lane.b32.xlu0 %v1826, 95
    %v1840 = vpop.permute.xlu0 %1839
    %1841 = vrot.lane.b32.xlu0 %v1827, 95
    %v1842 = vpop.permute.xlu0 %1841
    %1843 = vrot.lane.b32.xlu0 %v1828, 95
    %v1844 = vpop.permute.xlu0 %1843
    %1845 = vrot.lane.b32.xlu0 %v1829, 95
    %v1846 = vpop.permute.xlu0 %1845
    %1847 = vrot.lane.b32.xlu0 %v1830, 95
    %v1848 = vpop.permute.xlu0 %1847
    %v1849 = vsel %vm1660, %v1838, %v1840
    %v1850 = vsel %vm1660, %v1840, %v1842
    %v1851 = vsel %vm1660, %v1844, %v1846
    %v1852 = vsel %vm1660, %v1846, %v1848
    %v1857 = vadd.f32 %v1763, %v1849
    %v1858 = vadd.f32 %v1764, %v1850
    %v1859 = vadd.f32 %v1765, %v1851
    %v1860 = vadd.f32 %v1766, %v1852
    %1861 = vset.pattern.permute.xlu0 31
    %1862 = vperm.xlu0 %1861, %v1456
    %v1863 = vpop.permute.xlu0 %1862
    %v1865 = vlaneseq
    %v1866 = vshrl.u32 %v1865, 7
    %v1867 = vsub.s32 3, %v1866
    %v1868 = vrot.slane %v1570, %v1867
    %v1869 = vlaneseq
    %v1870 = vshrl.u32 %v1869, 7
    %v1871 = vsub.s32 7, %v1870
    %v1872 = vrot.slane %v1570, %v1871
    %v1873 = vlaneseq
    %v1874 = vshrl.u32 %v1873, 7
    %v1875 = vsub.s32 3, %v1874
    %v1876 = vrot.slane %v1571, %v1875
    %v1877 = vlaneseq
    %v1878 = vshrl.u32 %v1877, 7
    %v1879 = vsub.s32 3, %v1878
    %v1880 = vrot.slane %v1572, %v1879
    %v1881 = vlaneseq
    %v1882 = vshrl.u32 %v1881, 7
    %v1883 = vsub.s32 7, %v1882
    %v1884 = vrot.slane %v1572, %v1883
    %v1885 = vlaneseq
    %v1886 = vshrl.u32 %v1885, 7
    %v1887 = vsub.s32 3, %v1886
    %v1888 = vrot.slane %v1573, %v1887
    %v1895 = vlaneseq
    %v1896 = vshrl.u32 %v1895, 7
    %v1897 = vsub.s32 3, %v1896
    %v1898 = vrot.slane %v1868, %v1897
    %v1899 = vlaneseq
    %v1900 = vshrl.u32 %v1899, 7
    %v1901 = vsub.s32 3, %v1900
    %v1902 = vrot.slane %v1872, %v1901
    %v1903 = vlaneseq
    %v1904 = vshrl.u32 %v1903, 7
    %v1905 = vsub.s32 3, %v1904
    %v1906 = vrot.slane %v1876, %v1905
    %v1907 = vlaneseq
    %v1908 = vshrl.u32 %v1907, 7
    %v1909 = vsub.s32 3, %v1908
    %v1910 = vrot.slane %v1880, %v1909
    %v1911 = vlaneseq
    %v1912 = vshrl.u32 %v1911, 7
    %v1913 = vsub.s32 3, %v1912
    %v1914 = vrot.slane %v1884, %v1913
    %v1915 = vlaneseq
    %v1916 = vshrl.u32 %v1915, 7
    %v1917 = vsub.s32 3, %v1916
    %v1918 = vrot.slane %v1888, %v1917
    %v1919 = vmul.f32 %v1863, %v1898
    %v1920 = vmul.f32 %v1863, %v1902
    %v1921 = vmul.f32 %v1863, %v1906
    %v1922 = vmul.f32 %v1863, %v1910
    %v1923 = vmul.f32 %v1863, %v1914
    %v1924 = vmul.f32 %v1863, %v1918
    %1931 = vrot.lane.b32.xlu0 %v1919, 95
    %v1932 = vpop.permute.xlu0 %1931
    %1933 = vrot.lane.b32.xlu0 %v1920, 95
    %v1934 = vpop.permute.xlu0 %1933
    %1935 = vrot.lane.b32.xlu0 %v1921, 95
    %v1936 = vpop.permute.xlu0 %1935
    %1937 = vrot.lane.b32.xlu0 %v1922, 95
    %v1938 = vpop.permute.xlu0 %1937
    %1939 = vrot.lane.b32.xlu0 %v1923, 95
    %v1940 = vpop.permute.xlu0 %1939
    %1941 = vrot.lane.b32.xlu0 %v1924, 95
    %v1942 = vpop.permute.xlu0 %1941
    %v1943 = vsel %vm1660, %v1932, %v1934
    %v1944 = vsel %vm1660, %v1934, %v1936
    %v1945 = vsel %vm1660, %v1938, %v1940
    %v1946 = vsel %vm1660, %v1940, %v1942
    %v1951 = vadd.f32 %v1857, %v1943
    %v1952 = vadd.f32 %v1858, %v1944
    %v1953 = vadd.f32 %v1859, %v1945
    %v1954 = vadd.f32 %v1860, %v1946
    %v1955 = vcombine.high %v1570, %v1570
    %v1956 = vcombine.high %v1572, %v1572
    %1957 = vrot.lane.b32.xlu0 %v1570, 94
    %v1958 = vpop.permute.xlu0 %1957
    %1959 = vrot.lane.b32.xlu0 %v1955, 94
    %v1960 = vpop.permute.xlu0 %1959
    %1961 = vrot.lane.b32.xlu0 %v1571, 94
    %v1962 = vpop.permute.xlu0 %1961
    %1963 = vrot.lane.b32.xlu0 %v1572, 94
    %v1964 = vpop.permute.xlu0 %1963
    %1965 = vrot.lane.b32.xlu0 %v1956, 94
    %v1966 = vpop.permute.xlu0 %1965
    %1967 = vrot.lane.b32.xlu0 %v1573, 94
    %v1968 = vpop.permute.xlu0 %1967
    %vm1969 = vcmask 769024
    %v1970 = vsel %vm1969, %v1958, %v1960
    %v1971 = vsel %vm1969, %v1960, %v1962
    %v1972 = vsel %vm1969, %v1964, %v1966
    %v1973 = vsel %vm1969, %v1966, %v1968
    %v1978 = vsel %vm603, %v1970, 0.0
    %v1979 = vsel %vm604, %v1971, 0.0
    %v1980 = vsel %vm603, %v1972, 0.0
    %v1981 = vsel %vm604, %v1973, 0.0
    %v1982 = vld [vmem:[%s1] sm:$0xf]
    %1984 = vset.pattern.permute.xlu0 32
    %1985 = vperm.xlu0 %1984, %v1982
    %v1986 = vpop.permute.xlu0 %1985
    %v1988 = vlaneseq
    %v1989 = vshrl.u32 %v1988, 7
    %v1990 = vsub.s32 0, %v1989
    %v1991 = vrot.slane %v1978, %v1990
    %v1992 = vlaneseq
    %v1993 = vshrl.u32 %v1992, 7
    %v1994 = vsub.s32 0, %v1993
    %v1995 = vrot.slane %v1979, %v1994
    %v1996 = vlaneseq
    %v1997 = vshrl.u32 %v1996, 7
    %v1998 = vsub.s32 0, %v1997
    %v1999 = vrot.slane %v1980, %v1998
    %v2000 = vlaneseq
    %v2001 = vshrl.u32 %v2000, 7
    %v2002 = vsub.s32 0, %v2001
    %v2003 = vrot.slane %v1981, %v2002
    %v2004 = vmul.f32 %v1986, %v1991
    %v2005 = vmul.f32 %v1986, %v1995
    %v2006 = vmul.f32 %v1986, %v1999
    %v2007 = vmul.f32 %v1986, %v2003
    %v2008 = vadd.f32 %v1951, %v2004
    %v2009 = vadd.f32 %v1952, %v2005
    %v2010 = vadd.f32 %v1953, %v2006
    %v2011 = vadd.f32 %v1954, %v2007
    %2012 = vset.pattern.permute.xlu0 33
    %2013 = vperm.xlu0 %2012, %v1982
    %v2014 = vpop.permute.xlu0 %2013
    %v2016 = vlaneseq
    %v2017 = vshrl.u32 %v2016, 7
    %v2018 = vsub.s32 1, %v2017
    %v2019 = vrot.slane %v1978, %v2018
    %v2020 = vlaneseq
    %v2021 = vshrl.u32 %v2020, 7
    %v2022 = vsub.s32 1, %v2021
    %v2023 = vrot.slane %v1979, %v2022
    %v2024 = vlaneseq
    %v2025 = vshrl.u32 %v2024, 7
    %v2026 = vsub.s32 1, %v2025
    %v2027 = vrot.slane %v1980, %v2026
    %v2028 = vlaneseq
    %v2029 = vshrl.u32 %v2028, 7
    %v2030 = vsub.s32 1, %v2029
    %v2031 = vrot.slane %v1981, %v2030
    %v2032 = vmul.f32 %v2014, %v2019
    %v2033 = vmul.f32 %v2014, %v2023
    %v2034 = vmul.f32 %v2014, %v2027
    %v2035 = vmul.f32 %v2014, %v2031
    %v2036 = vadd.f32 %v2008, %v2032
    %v2037 = vadd.f32 %v2009, %v2033
    %v2038 = vadd.f32 %v2010, %v2034
    %v2039 = vadd.f32 %v2011, %v2035
    %2040 = vset.pattern.permute.xlu0 34
    %2041 = vperm.xlu0 %2040, %v1982
    %v2042 = vpop.permute.xlu0 %2041
    %v2044 = vlaneseq
    %v2045 = vshrl.u32 %v2044, 7
    %v2046 = vsub.s32 2, %v2045
    %v2047 = vrot.slane %v1978, %v2046
    %v2048 = vlaneseq
    %v2049 = vshrl.u32 %v2048, 7
    %v2050 = vsub.s32 2, %v2049
    %v2051 = vrot.slane %v1979, %v2050
    %v2052 = vlaneseq
    %v2053 = vshrl.u32 %v2052, 7
    %v2054 = vsub.s32 2, %v2053
    %v2055 = vrot.slane %v1980, %v2054
    %v2056 = vlaneseq
    %v2057 = vshrl.u32 %v2056, 7
    %v2058 = vsub.s32 2, %v2057
    %v2059 = vrot.slane %v1981, %v2058
    %v2060 = vmul.f32 %v2042, %v2047
    %v2061 = vmul.f32 %v2042, %v2051
    %v2062 = vmul.f32 %v2042, %v2055
    %v2063 = vmul.f32 %v2042, %v2059
    %v2064 = vadd.f32 %v2036, %v2060
    %v2065 = vadd.f32 %v2037, %v2061
    %v2066 = vadd.f32 %v2038, %v2062
    %v2067 = vadd.f32 %v2039, %v2063
    %2068 = vset.pattern.permute.xlu0 35
    %2069 = vperm.xlu0 %2068, %v1982
    %v2070 = vpop.permute.xlu0 %2069
    %v2072 = vlaneseq
    %v2073 = vshrl.u32 %v2072, 7
    %v2074 = vsub.s32 3, %v2073
    %v2075 = vrot.slane %v1978, %v2074
    %v2076 = vlaneseq
    %v2077 = vshrl.u32 %v2076, 7
    %v2078 = vsub.s32 3, %v2077
    %v2079 = vrot.slane %v1979, %v2078
    %v2080 = vlaneseq
    %v2081 = vshrl.u32 %v2080, 7
    %v2082 = vsub.s32 3, %v2081
    %v2083 = vrot.slane %v1980, %v2082
    %v2084 = vlaneseq
    %v2085 = vshrl.u32 %v2084, 7
    %v2086 = vsub.s32 3, %v2085
    %v2087 = vrot.slane %v1981, %v2086
    %v2088 = vmul.f32 %v2070, %v2075
    %v2089 = vmul.f32 %v2070, %v2079
    %v2090 = vmul.f32 %v2070, %v2083
    %v2091 = vmul.f32 %v2070, %v2087
    %v2092 = vadd.f32 %v2064, %v2088
    %v2093 = vadd.f32 %v2065, %v2089
    %v2094 = vadd.f32 %v2066, %v2090
    %v2095 = vadd.f32 %v2067, %v2091
    %v2096 = vld [vmem:[%s2] sm:$0xf]
    %v2097 = vld [vmem:[%s3] sm:$0xf]
    %vm2098 = vcmask 1043456
    %v2099 = vsel %vm2098, %v2092, 0.0
    %v2100 = vsel %vm2098, %v2093, 0.0
    %v2101 = vadd.f32 %v2099, %v2100
    %2102 = vadd.xlane.f32.xlu0 %v2101
    %v2103 = vpop.xlane.xlu0 %2102
    %v2104 = vsel %vm2098, %v2094, 0.0
    %v2105 = vsel %vm2098, %v2095, 0.0
    %v2106 = vadd.f32 %v2104, %v2105
    %2107 = vadd.xlane.f32.xlu0 %v2106
    %v2108 = vpop.xlane.xlu0 %2107
    %v2109 = vsel %vm2098, %v2103, 0.0
    %v2110 = vsel %vm2098, %v2108, 0.0
    %v2111 = vadd.f32 %v2109, %v2110
    %v2112 = vmul.f32 %v2092, %v2092
    %v2113 = vmul.f32 %v2093, %v2093
    %v2114 = vmul.f32 %v2094, %v2094
    %v2115 = vmul.f32 %v2095, %v2095
    %v2116 = vsel %vm2098, %v2112, 0.0
    %v2117 = vsel %vm2098, %v2113, 0.0
    %v2118 = vadd.f32 %v2116, %v2117
    %2119 = vadd.xlane.f32.xlu0 %v2118
    %v2120 = vpop.xlane.xlu0 %2119
    %v2121 = vsel %vm2098, %v2114, 0.0
    %v2122 = vsel %vm2098, %v2115, 0.0
    %v2123 = vadd.f32 %v2121, %v2122
    %2124 = vadd.xlane.f32.xlu0 %v2123
    %v2125 = vpop.xlane.xlu0 %2124
    %v2126 = vsel %vm2098, %v2120, 0.0
    %v2127 = vsel %vm2098, %v2125, 0.0
    %v2128 = vadd.f32 %v2126, %v2127
    %v2129 = vmul.f32 %v2111, 0.001953125
    %v2130 = vmul.f32 %v2128, 0.001953125
    %v2131 = vmul.f32 %v2129, %v2129
    %v2132 = vsub.f32 %v2130, %v2131
    %v2133 = vmax.f32 %v2132, 0.0
    %v2134 = vadd.f32 %v2133, 1e-05
    %v2135 = vrsqrt.pop %v2134
    %v2136 = vmul.f32 %v2096, %v2135
    %v2137 = vmul.f32 %v2129, %v2136
    %v2138 = vsub.f32 %v2097, %v2137
    %2140 = vset.pattern.permute.xlu0 0
    %2141 = vperm.xlu0 %2140, %v2136
    %v2142 = vpop.permute.xlu0 %2141
    %v2144 = vmul.f32 %v2092, %v2142
    %v2145 = vmul.f32 %v2093, %v2142
    %v2146 = vmul.f32 %v2094, %v2142
    %v2147 = vmul.f32 %v2095, %v2142
    %2149 = vset.pattern.permute.xlu0 0
    %2150 = vperm.xlu0 %2149, %v2138
    %v2151 = vpop.permute.xlu0 %2150
    %v2153 = vadd.f32 %v2144, %v2151
    %v2154 = vadd.f32 %v2145, %v2151
    %v2155 = vadd.f32 %v2146, %v2151
    %v2156 = vadd.f32 %v2147, %v2151
    %v2157 = vmax.f32 %v2153, 0.0
    %v2158 = vmax.f32 %v2154, 0.0
    %v2159 = vmax.f32 %v2155, 0.0
    %v2160 = vmax.f32 %v2156, 0.0
    %v2161 = vld [vmem:[%s4] sm:$0xf]
    %2163 = vset.pattern.permute.xlu0 0
    %2164 = vperm.xlu0 %2163, %v2161
    %v2165 = vpop.permute.xlu0 %2164
    %v2167 = vlaneseq
    %v2168 = vshrl.u32 %v2167, 7
    %v2169 = vsub.s32 0, %v2168
    %v2170 = vrot.slane %v2157, %v2169
    %v2171 = vlaneseq
    %v2172 = vshrl.u32 %v2171, 7
    %v2173 = vsub.s32 0, %v2172
    %v2174 = vrot.slane %v2158, %v2173
    %v2175 = vlaneseq
    %v2176 = vshrl.u32 %v2175, 7
    %v2177 = vsub.s32 0, %v2176
    %v2178 = vrot.slane %v2159, %v2177
    %v2179 = vlaneseq
    %v2180 = vshrl.u32 %v2179, 7
    %v2181 = vsub.s32 0, %v2180
    %v2182 = vrot.slane %v2160, %v2181
    %v2183 = vmul.f32 %v2165, %v2170
    %v2184 = vmul.f32 %v2165, %v2174
    %v2185 = vmul.f32 %v2165, %v2178
    %v2186 = vmul.f32 %v2165, %v2182
    %2187 = vset.pattern.permute.xlu0 1
    %2188 = vperm.xlu0 %2187, %v2161
    %v2189 = vpop.permute.xlu0 %2188
    %v2191 = vlaneseq
    %v2192 = vshrl.u32 %v2191, 7
    %v2193 = vsub.s32 1, %v2192
    %v2194 = vrot.slane %v2157, %v2193
    %v2195 = vlaneseq
    %v2196 = vshrl.u32 %v2195, 7
    %v2197 = vsub.s32 1, %v2196
    %v2198 = vrot.slane %v2158, %v2197
    %v2199 = vlaneseq
    %v2200 = vshrl.u32 %v2199, 7
    %v2201 = vsub.s32 1, %v2200
    %v2202 = vrot.slane %v2159, %v2201
    %v2203 = vlaneseq
    %v2204 = vshrl.u32 %v2203, 7
    %v2205 = vsub.s32 1, %v2204
    %v2206 = vrot.slane %v2160, %v2205
    %v2207 = vmul.f32 %v2189, %v2194
    %v2208 = vmul.f32 %v2189, %v2198
    %v2209 = vmul.f32 %v2189, %v2202
    %v2210 = vmul.f32 %v2189, %v2206
    %v2211 = vadd.f32 %v2183, %v2207
    %v2212 = vadd.f32 %v2184, %v2208
    %v2213 = vadd.f32 %v2185, %v2209
    %v2214 = vadd.f32 %v2186, %v2210
    %2215 = vset.pattern.permute.xlu0 2
    %2216 = vperm.xlu0 %2215, %v2161
    %v2217 = vpop.permute.xlu0 %2216
    %v2219 = vlaneseq
    %v2220 = vshrl.u32 %v2219, 7
    %v2221 = vsub.s32 2, %v2220
    %v2222 = vrot.slane %v2157, %v2221
    %v2223 = vlaneseq
    %v2224 = vshrl.u32 %v2223, 7
    %v2225 = vsub.s32 2, %v2224
    %v2226 = vrot.slane %v2158, %v2225
    %v2227 = vlaneseq
    %v2228 = vshrl.u32 %v2227, 7
    %v2229 = vsub.s32 2, %v2228
    %v2230 = vrot.slane %v2159, %v2229
    %v2231 = vlaneseq
    %v2232 = vshrl.u32 %v2231, 7
    %v2233 = vsub.s32 2, %v2232
    %v2234 = vrot.slane %v2160, %v2233
    %v2235 = vmul.f32 %v2217, %v2222
    %v2236 = vmul.f32 %v2217, %v2226
    %v2237 = vmul.f32 %v2217, %v2230
    %v2238 = vmul.f32 %v2217, %v2234
    %v2239 = vadd.f32 %v2211, %v2235
    %v2240 = vadd.f32 %v2212, %v2236
    %v2241 = vadd.f32 %v2213, %v2237
    %v2242 = vadd.f32 %v2214, %v2238
    %2243 = vset.pattern.permute.xlu0 3
    %2244 = vperm.xlu0 %2243, %v2161
    %v2245 = vpop.permute.xlu0 %2244
    %v2247 = vlaneseq
    %v2248 = vshrl.u32 %v2247, 7
    %v2249 = vsub.s32 3, %v2248
    %v2250 = vrot.slane %v2157, %v2249
    %v2251 = vlaneseq
    %v2252 = vshrl.u32 %v2251, 7
    %v2253 = vsub.s32 3, %v2252
    %v2254 = vrot.slane %v2158, %v2253
    %v2255 = vlaneseq
    %v2256 = vshrl.u32 %v2255, 7
    %v2257 = vsub.s32 3, %v2256
    %v2258 = vrot.slane %v2159, %v2257
    %v2259 = vlaneseq
    %v2260 = vshrl.u32 %v2259, 7
    %v2261 = vsub.s32 3, %v2260
    %v2262 = vrot.slane %v2160, %v2261
    %v2263 = vmul.f32 %v2245, %v2250
    %v2264 = vmul.f32 %v2245, %v2254
    %v2265 = vmul.f32 %v2245, %v2258
    %v2266 = vmul.f32 %v2245, %v2262
    %v2267 = vadd.f32 %v2239, %v2263
    %v2268 = vadd.f32 %v2240, %v2264
    %v2269 = vadd.f32 %v2241, %v2265
    %v2270 = vadd.f32 %v2242, %v2266
    %v2271 = vld [vmem:[%s5] sm:$0xf]
    %v2272 = vld [vmem:[%s6] sm:$0xf]
    %v2273 = vsel %vm2098, %v2267, 0.0
    %v2274 = vsel %vm2098, %v2268, 0.0
    %v2275 = vadd.f32 %v2273, %v2274
    %2276 = vadd.xlane.f32.xlu0 %v2275
    %v2277 = vpop.xlane.xlu0 %2276
    %v2278 = vsel %vm2098, %v2269, 0.0
    %v2279 = vsel %vm2098, %v2270, 0.0
    %v2280 = vadd.f32 %v2278, %v2279
    %2281 = vadd.xlane.f32.xlu0 %v2280
    %v2282 = vpop.xlane.xlu0 %2281
    %v2283 = vsel %vm2098, %v2277, 0.0
    %v2284 = vsel %vm2098, %v2282, 0.0
    %v2285 = vadd.f32 %v2283, %v2284
    %v2286 = vmul.f32 %v2267, %v2267
    %v2287 = vmul.f32 %v2268, %v2268
    %v2288 = vmul.f32 %v2269, %v2269
    %v2289 = vmul.f32 %v2270, %v2270
    %v2290 = vsel %vm2098, %v2286, 0.0
    %v2291 = vsel %vm2098, %v2287, 0.0
    %v2292 = vadd.f32 %v2290, %v2291
    %2293 = vadd.xlane.f32.xlu0 %v2292
    %v2294 = vpop.xlane.xlu0 %2293
    %v2295 = vsel %vm2098, %v2288, 0.0
    %v2296 = vsel %vm2098, %v2289, 0.0
    %v2297 = vadd.f32 %v2295, %v2296
    %2298 = vadd.xlane.f32.xlu0 %v2297
    %v2299 = vpop.xlane.xlu0 %2298
    %v2300 = vsel %vm2098, %v2294, 0.0
    %v2301 = vsel %vm2098, %v2299, 0.0
    %v2302 = vadd.f32 %v2300, %v2301
    %v2303 = vmul.f32 %v2285, 0.001953125
    %v2304 = vmul.f32 %v2302, 0.001953125
    %v2305 = vmul.f32 %v2303, %v2303
    %v2306 = vsub.f32 %v2304, %v2305
    %v2307 = vmax.f32 %v2306, 0.0
    %v2308 = vadd.f32 %v2307, 1e-05
    %v2309 = vrsqrt.pop %v2308
    %v2310 = vmul.f32 %v2271, %v2309
    %v2311 = vmul.f32 %v2303, %v2310
    %v2312 = vsub.f32 %v2272, %v2311
    %2314 = vset.pattern.permute.xlu0 0
    %2315 = vperm.xlu0 %2314, %v2310
    %v2316 = vpop.permute.xlu0 %2315
    %v2318 = vmul.f32 %v2267, %v2316
    %v2319 = vmul.f32 %v2268, %v2316
    %v2320 = vmul.f32 %v2269, %v2316
    %v2321 = vmul.f32 %v2270, %v2316
    %v2326 = vcombine.low %v2318, %v2319
    %v2327 = vcombine.low %v2320, %v2321
    %v2330 = vadd.f32 %v27, %v2326
    %v2331 = vadd.f32 %v28, %v2327
    %2333 = vset.pattern.permute.xlu0 0
    %2334 = vperm.xlu0 %2333, %v2312
    %v2335 = vpop.permute.xlu0 %2334
    %v2337 = vunpack.c.l.s4 839922192
    %v2338 = vunpack.c.0.s8 %v2337
    %v2339 = vlaneseq
    %v2340 = vshrl.u32 %v2339, 7
    %v2341 = vsub.s32 %v2338, %v2340
    %v2342 = vrot.slane %v2335, %v2341
    %v2344 = vadd.f32 %v2330, %v2342
    %v2345 = vadd.f32 %v2331, %v2342
    %2346 = vst [vmem:[#allocation3] sm:$0xff] %v2344
    %2347 = vst [vmem:[#allocation3 + $0x8] sm:$0xff] %v2345
    // Predicated region
    $region30: #{tpu_custom_call.1} parent=1 // pred_check
      _
    $region31: #{tpu_custom_call.1} parent=1 // pred_check_branch
      %2349 = sbr.rel (0) target = $region33
    $region32: #{tpu_custom_call.1} parent=1 // pred_region
      %s2351 = ssub.s32 256, 256
      %2352 = vsyncadd [#allocation4], %s2351
      %s2353 = sshll.u32 [#allocation3], 4
      %s2354 = int_to_ptr.vmem [resolvable:$true] %s2353
      %2359 = dma.vmem_to_hbm [thread:$0]  %s2354, 256, %s7, [#allocation4], 128, 128, 8
    $region33: #{tpu_custom_call.1} parent=1 // pred_fallthru
      _
    // Predicated region
    $region34: #{tpu_custom_call.1} parent=1 // pred_check
      _
    $region35: #{tpu_custom_call.1} parent=1 // pred_check_branch
      %2361 = sbr.rel (0) target = $region37
    $region36: #{tpu_custom_call.1} parent=1 // pred_region
      %2362 = dma.done [#allocation4], 256
    $region37: #{tpu_custom_call.1} parent=1 // pred_fallthru
      _
    %2363 = vsyncpa [#allocation4], 1

</llo_original>
